<compile_context>
chip_gen: v6e
topology: v6e:2x2x1
jax: 0.10.0
libtpu: 0.0.40
codegen_flags: <defaults>
</compile_context>

<pallas_src>
import functools
import math

import jax
import jax.numpy as jnp
from jax import lax
from jax.experimental import pallas as pl
from jax.experimental.pallas import tpu as pltpu


def _layernorm(x, gamma, beta, eps=1e-5):
    mean = jnp.mean(x, axis=-1, keepdims=True)
    var = jnp.mean(jnp.square(x - mean), axis=-1, keepdims=True)
    return (x - mean) * lax.rsqrt(var + eps) * gamma + beta


def decoder_kernel(x_ref, wqkv_ref, bqkv_ref, wo_ref, bo_ref,
                   g1_ref, be1_ref, w1_ref, b1_ref, w2_ref, b2_ref,
                   g2_ref, be2_ref, wout_ref, bout_ref, out_ref,
                   *, seq, batch, d_model, num_heads, vocab, mm_dtype):
    S, B, D, H, V = seq, batch, d_model, num_heads, vocab
    Dh = D // H
    scale = 1.0 / math.sqrt(Dh)

    x = x_ref[...]                                         # (B*S, D), f32

    # --- fused QKV projection over all batch rows: one (B*S, D) x (D, 3D) matmul ---
    qkv = jnp.dot(x.astype(mm_dtype), wqkv_ref[...].astype(mm_dtype),
                  preferred_element_type=jnp.float32) + bqkv_ref[...]   # (B*S, 3D)
    q = qkv[:, 0:D]
    k = qkv[:, D:2 * D]
    v = qkv[:, 2 * D:3 * D]

    # causal additive mask: 0 on/below diagonal, large-negative above
    row = lax.broadcasted_iota(jnp.int32, (S, S), 0)
    col = lax.broadcasted_iota(jnp.int32, (S, S), 1)
    mask = jnp.where(col <= row, 0.0, -1e30).astype(jnp.float32)

    # --- multi-head causal attention, batched over B per head (no explicit k.T) ---
    ctx_heads = []
    for h in range(H):                                     # H small, static unroll
        qh = q[:, h * Dh:(h + 1) * Dh].reshape(B, S, Dh)
        kh = k[:, h * Dh:(h + 1) * Dh].reshape(B, S, Dh)
        vh = v[:, h * Dh:(h + 1) * Dh].reshape(B, S, Dh)
        s = jnp.einsum('bqd,bkd->bqk', qh.astype(mm_dtype), kh.astype(mm_dtype),
                       preferred_element_type=jnp.float32) * scale + mask  # (B,S,S)
        s = s - jnp.max(s, axis=-1, keepdims=True)
        p = jnp.exp(s)
        inv_den = pl.reciprocal(jnp.sum(p, axis=-1, keepdims=True), approx=False)
        p = p * inv_den
        ctx_h = jnp.einsum('bqk,bkd->bqd', p.astype(mm_dtype), vh.astype(mm_dtype),
                           preferred_element_type=jnp.float32)             # (B,S,Dh)
        ctx_heads.append(ctx_h.reshape(B * S, Dh))
    ctx = jnp.concatenate(ctx_heads, axis=-1)              # (B*S, D)

    # --- single output projection over all heads & batch rows ---
    attn = jnp.dot(ctx.astype(mm_dtype), wo_ref[...].astype(mm_dtype),
                   preferred_element_type=jnp.float32) + bo_ref[...]       # (B*S, D)

    y = _layernorm(x + attn, g1_ref[...], be1_ref[...])

    # --- fused FFN over all batch rows ---
    hdn = jnp.maximum(jnp.dot(y.astype(mm_dtype), w1_ref[...].astype(mm_dtype),
                              preferred_element_type=jnp.float32) + b1_ref[...], 0.0)
    ff = jnp.dot(hdn.astype(mm_dtype), w2_ref[...].astype(mm_dtype),
                 preferred_element_type=jnp.float32) + b2_ref[...]
    z = _layernorm(y + ff, g2_ref[...], be2_ref[...])

    # --- fused vocab projection ---
    logits = jnp.dot(z.astype(mm_dtype), wout_ref[...].astype(mm_dtype),
                     preferred_element_type=jnp.float32) + bout_ref[...]   # (B*S, V)

    # nn.LogSoftmax(dim=1) on the (S, B, V) output == log-softmax across the batch
    # axis: reduce over axis 0 of the (B, S, V) view, single full-ref store.
    logits3 = logits.reshape(B, S, V)
    m = jnp.max(logits3, axis=0)                                           # (S, V)
    lse = jnp.log(jnp.sum(jnp.exp(logits3 - m), axis=0)) + m               # (S, V)
    out_ref[...] = logits3 - lse                                           # (B, S, V)


def init_params(key, vocab, d_model, ff_hidden, max_len=64):
    ks = jax.random.split(key, 10)

    def nrm(k, shape, scale=0.1):
        return (scale * jax.random.normal(k, shape)).astype(jnp.float32)

    params = dict(
        embedding=nrm(ks[0], (vocab, d_model), 1.0),
        w_in=nrm(ks[1], (3 * d_model, d_model)),
        b_in=nrm(ks[2], (3 * d_model,)),
        w_o=nrm(ks[3], (d_model, d_model)),
        b_o=nrm(ks[4], (d_model,)),
        ln1_g=jnp.ones((d_model,), jnp.float32),
        ln1_b=jnp.zeros((d_model,), jnp.float32),
        w1=nrm(ks[5], (ff_hidden, d_model)),
        b1=nrm(ks[6], (ff_hidden,)),
        w2=nrm(ks[7], (d_model, ff_hidden)),
        b2=nrm(ks[8], (d_model,)),
        ln2_g=jnp.ones((d_model,), jnp.float32),
        ln2_b=jnp.zeros((d_model,), jnp.float32),
        w_out=nrm(ks[9], (vocab, d_model)),
        b_out=jnp.zeros((vocab,), jnp.float32),
    )
    # sinusoidal positional-encoding table, same math as PositionalEncoding.__init__
    position = jnp.arange(max_len, dtype=jnp.float32)[:, None]
    div_term = jnp.exp(jnp.arange(0, d_model, 2, dtype=jnp.float32)
                       * (-math.log(10000.0) / d_model))
    pe = jnp.zeros((max_len, d_model), jnp.float32)
    pe = pe.at[:, 0::2].set(jnp.sin(position * div_term))
    pe = pe.at[:, 1::2].set(jnp.cos(position * div_term))
    params['pe'] = pe
    return params


def transformer_decoder_forward(tokens, params, *, num_heads,
                                mm_dtype=jnp.float32):
    # mm_dtype=jnp.bfloat16 is the right setting on v6e/v7x at scaled sizes
    # (cast only at dot boundaries; element-wise math stays f32).
    S, B = tokens.shape
    D = params['embedding'].shape[1]
    V = params['w_out'].shape[0]

    # glue: embedding lookup + positional encoding (dropout = identity)
    x = params['embedding'][tokens] + params['pe'][:S][:, None, :]       # (S, B, D)
    xb = x.transpose(1, 0, 2).reshape(B * S, D).astype(jnp.float32)      # (B*S, D)

    kernel = functools.partial(decoder_kernel, seq=S, batch=B, d_model=D,
                               num_heads=num_heads, vocab=V, mm_dtype=mm_dtype)
    n_in = 15
    # TODO(synk): at scaled (d_model/ff/vocab in the thousands) sizes, tile the vocab
    # projection and sequence via a BlockSpec grid (parallel over seq for v7x's two
    # TensorCores) instead of this full-residency single invocation; at the toy size
    # used here the kernel is fixed-overhead bound and a grid only adds step overhead.
    out3 = pl.pallas_call(
        kernel,
        out_shape=jax.ShapeDtypeStruct((B, S, V), jnp.float32),
        in_specs=[pl.BlockSpec(memory_space=pltpu.MemorySpace.VMEM)] * n_in,
        out_specs=pl.BlockSpec(memory_space=pltpu.MemorySpace.VMEM),
    )(xb,
      params['w_in'].T, params['b_in'][None, :],
      params['w_o'].T, params['b_o'][None, :],
      params['ln1_g'][None, :], params['ln1_b'][None, :],
      params['w1'].T, params['b1'][None, :],
      params['w2'].T, params['b2'][None, :],
      params['ln2_g'][None, :], params['ln2_b'][None, :],
      params['w_out'].T, params['b_out'][None, :])
    return out3.transpose(1, 0, 2)                                       # (S, B, V)


def reference_forward(tokens, params, *, num_heads):
    # pure-JAX reference mirroring the PyTorch module (eval mode)
    S, B = tokens.shape
    D = params['embedding'].shape[1]
    H = num_heads
    Dh = D // H
    x = params['embedding'][tokens] + params['pe'][:S][:, None, :]       # (S, B, D)
    mask = jnp.where(jnp.tril(jnp.ones((S, S))) > 0, 0.0, -jnp.inf)
    qkv = x @ params['w_in'].T + params['b_in']
    q, k, v = jnp.split(qkv, 3, axis=-1)

    def split_heads(t):  # (S,B,D) -> (B,H,S,Dh)
        return t.reshape(S, B, H, Dh).transpose(1, 2, 0, 3)

    qh, kh, vh = map(split_heads, (q, k, v))
    s = jnp.einsum('bhsd,bhtd->bhst', qh, kh) / math.sqrt(Dh) + mask
    p = jax.nn.softmax(s, axis=-1)
    ctx = jnp.einsum('bhst,bhtd->bhsd', p, vh).transpose(2, 0, 1, 3).reshape(S, B, D)
    attn = ctx @ params['w_o'].T + params['b_o']

    def ln(t, g, b):
        mu = t.mean(-1, keepdims=True)
        var = ((t - mu) ** 2).mean(-1, keepdims=True)
        return (t - mu) / jnp.sqrt(var + 1e-5) * g + b

    y = ln(x + attn, params['ln1_g'], params['ln1_b'])
    ff = jnp.maximum(y @ params['w1'].T + params['b1'], 0.0) @ params['w2'].T + params['b2']
    z = ln(y + ff, params['ln2_g'], params['ln2_b'])
    logits = z @ params['w_out'].T + params['b_out']                     # (S, B, V)
    return jax.nn.log_softmax(logits, axis=1)                            # dim=1 as in PyTorch


if __name__ == "__main__":
    vocab, d_model, num_heads, ff_hidden = 32, 32, 4, 64
    seq, batch = 8, 2

    key = jax.random.PRNGKey(0)
    pkey, tkey = jax.random.split(key)
    params = init_params(pkey, vocab, d_model, ff_hidden)
    tokens = jax.random.randint(tkey, (seq, batch), 0, vocab, dtype=jnp.int32)

    out = transformer_decoder_forward(tokens, params, num_heads=num_heads)
    out = jax.block_until_ready(out)

    ref = reference_forward(tokens, params, num_heads=num_heads)
    assert out.shape == (seq, batch, vocab)
    assert bool(jnp.allclose(out, ref, atol=1e-4, rtol=1e-4)), \
        f"max abs err {float(jnp.max(jnp.abs(out - ref)))}"
    print("KERNEL_OK")
</pallas_src>

<mosaic_0001>
module attributes {stable_mosaic.version = 11 : i64} {
  func.func @decoder_kernel(%arg0: memref<16x32xf32, #tpu.memory_space<vmem>>, %arg1: memref<32x96xf32, #tpu.memory_space<vmem>>, %arg2: memref<1x96xf32, #tpu.memory_space<vmem>>, %arg3: memref<32x32xf32, #tpu.memory_space<vmem>>, %arg4: memref<1x32xf32, #tpu.memory_space<vmem>>, %arg5: memref<1x32xf32, #tpu.memory_space<vmem>>, %arg6: memref<1x32xf32, #tpu.memory_space<vmem>>, %arg7: memref<32x64xf32, #tpu.memory_space<vmem>>, %arg8: memref<1x64xf32, #tpu.memory_space<vmem>>, %arg9: memref<64x32xf32, #tpu.memory_space<vmem>>, %arg10: memref<1x32xf32, #tpu.memory_space<vmem>>, %arg11: memref<1x32xf32, #tpu.memory_space<vmem>>, %arg12: memref<1x32xf32, #tpu.memory_space<vmem>>, %arg13: memref<32x32xf32, #tpu.memory_space<vmem>>, %arg14: memref<1x32xf32, #tpu.memory_space<vmem>>, %arg15: memref<2x8x32xf32, #tpu.memory_space<vmem>>) attributes {dimension_semantics = [], scalar_prefetch = 0 : i64, scratch_operands = 0 : i64, tpu.core_type = #tpu.core_type<tc>} {
    %c0 = arith.constant 0 : index
    %c0_0 = arith.constant 0 : index
    %0 = vector.load %arg0[%c0, %c0_0] : memref<16x32xf32, #tpu.memory_space<vmem>>, vector<16x32xf32>
    %c0_1 = arith.constant 0 : index
    %c0_2 = arith.constant 0 : index
    %1 = vector.load %arg1[%c0_1, %c0_2] : memref<32x96xf32, #tpu.memory_space<vmem>>, vector<32x96xf32>
    %cst = arith.constant dense<0.000000e+00> : vector<16x96xf32>
    %2 = tpu.matmul %0, %1, %cst {dimension_numbers = #tpu.dot_dimension_numbers<[1], [0], [0], [1], [0, 0, 1, 1], [], []>} : vector<16x32xf32>, vector<32x96xf32>, vector<16x96xf32> -> vector<16x96xf32>
    %c0_3 = arith.constant 0 : index
    %c0_4 = arith.constant 0 : index
    %3 = vector.load %arg2[%c0_3, %c0_4] : memref<1x96xf32, #tpu.memory_space<vmem>>, vector<1x96xf32>
    %4 = vector.broadcast %3 : vector<1x96xf32> to vector<16x96xf32>
    %5 = arith.addf %2, %4 : vector<16x96xf32>
    %6 = vector.extract_strided_slice %5 {offsets = [0, 0], sizes = [16, 32], strides = [1, 1]} : vector<16x96xf32> to vector<16x32xf32>
    %7 = vector.extract_strided_slice %5 {offsets = [0, 32], sizes = [16, 32], strides = [1, 1]} : vector<16x96xf32> to vector<16x32xf32>
    %8 = vector.extract_strided_slice %5 {offsets = [0, 64], sizes = [16, 32], strides = [1, 1]} : vector<16x96xf32> to vector<16x32xf32>
    %9 = tpu.iota {dimensions = array<i32: 0>} : vector<8x8xi32>
    %10 = tpu.iota {dimensions = array<i32: 1>} : vector<8x8xi32>
    %11 = arith.cmpi sle, %10, %9 : vector<8x8xi32>
    %cst_5 = arith.constant 0.000000e+00 : f32
    %cst_6 = arith.constant -1.000000e+30 : f32
    %12 = vector.broadcast %cst_5 : f32 to vector<8x8xf32>
    %13 = vector.broadcast %cst_6 : f32 to vector<8x8xf32>
    %14 = arith.select %11, %12, %13 : vector<8x8xi1>, vector<8x8xf32>
    %15 = vector.extract_strided_slice %6 {offsets = [0, 0], sizes = [16, 8], strides = [1, 1]} : vector<16x32xf32> to vector<16x8xf32>
    %16 = vector.shape_cast %15 : vector<16x8xf32> to vector<2x8x8xf32>
    %17 = vector.extract_strided_slice %7 {offsets = [0, 0], sizes = [16, 8], strides = [1, 1]} : vector<16x32xf32> to vector<16x8xf32>
    %18 = vector.shape_cast %17 : vector<16x8xf32> to vector<2x8x8xf32>
    %19 = vector.extract_strided_slice %8 {offsets = [0, 0], sizes = [16, 8], strides = [1, 1]} : vector<16x32xf32> to vector<16x8xf32>
    %20 = vector.shape_cast %19 : vector<16x8xf32> to vector<2x8x8xf32>
    "tpu.trace_start"() <{level = 10 : i32, message = "bqd,bkd->bqk"}> : () -> ()
    %cst_7 = arith.constant dense<0.000000e+00> : vector<2x8x8xf32>
    %21 = tpu.matmul %16, %18, %cst_7 {dimension_numbers = #tpu.dot_dimension_numbers<[2], [2], [1], [1], [0, 0, 0, 1, 1, 1], [0], [0]>} : vector<2x8x8xf32>, vector<2x8x8xf32>, vector<2x8x8xf32> -> vector<2x8x8xf32>
    "tpu.trace_stop"() : () -> ()
    %cst_8 = arith.constant 0.353553385 : f32
    %22 = vector.broadcast %cst_8 : f32 to vector<2x8x8xf32>
    %23 = arith.mulf %21, %22 : vector<2x8x8xf32>
    %24 = vector.shape_cast %14 : vector<8x8xf32> to vector<1x8x8xf32>
    %25 = vector.broadcast %24 : vector<1x8x8xf32> to vector<2x8x8xf32>
    %26 = arith.addf %23, %25 : vector<2x8x8xf32>
    %cst_9 = arith.constant dense<0xFF800000> : vector<2x8xf32>
    %27 = vector.multi_reduction <maximumf>, %26, %cst_9 [2] : vector<2x8x8xf32> to vector<2x8xf32>
    %28 = vector.shape_cast %27 : vector<2x8xf32> to vector<2x8x1xf32>
    %29 = vector.broadcast %28 : vector<2x8x1xf32> to vector<2x8x8xf32>
    %30 = arith.subf %26, %29 : vector<2x8x8xf32>
    %31 = math.exp %30 : vector<2x8x8xf32>
    %cst_10 = arith.constant dense<0.000000e+00> : vector<2x8xf32>
    %32 = vector.multi_reduction <add>, %31, %cst_10 [2] : vector<2x8x8xf32> to vector<2x8xf32>
    %33 = vector.shape_cast %32 : vector<2x8xf32> to vector<2x8x1xf32>
    %34 = tpu.reciprocal %33 : vector<2x8x1xf32> -> vector<2x8x1xf32>
    %35 = vector.broadcast %34 : vector<2x8x1xf32> to vector<2x8x8xf32>
    %36 = arith.mulf %31, %35 : vector<2x8x8xf32>
    "tpu.trace_start"() <{level = 10 : i32, message = "bqk,bkd->bqd"}> : () -> ()
    %cst_11 = arith.constant dense<0.000000e+00> : vector<2x8x8xf32>
    %37 = tpu.matmul %36, %20, %cst_11 {dimension_numbers = #tpu.dot_dimension_numbers<[2], [1], [1], [2], [0, 0, 0, 1, 1, 2], [0], [0]>} : vector<2x8x8xf32>, vector<2x8x8xf32>, vector<2x8x8xf32> -> vector<2x8x8xf32>
    "tpu.trace_stop"() : () -> ()
    %38 = vector.shape_cast %37 : vector<2x8x8xf32> to vector<16x8xf32>
    %39 = vector.extract_strided_slice %6 {offsets = [0, 8], sizes = [16, 8], strides = [1, 1]} : vector<16x32xf32> to vector<16x8xf32>
    %40 = vector.shape_cast %39 : vector<16x8xf32> to vector<2x8x8xf32>
    %41 = vector.extract_strided_slice %7 {offsets = [0, 8], sizes = [16, 8], strides = [1, 1]} : vector<16x32xf32> to vector<16x8xf32>
    %42 = vector.shape_cast %41 : vector<16x8xf32> to vector<2x8x8xf32>
    %43 = vector.extract_strided_slice %8 {offsets = [0, 8], sizes = [16, 8], strides = [1, 1]} : vector<16x32xf32> to vector<16x8xf32>
    %44 = vector.shape_cast %43 : vector<16x8xf32> to vector<2x8x8xf32>
    "tpu.trace_start"() <{level = 10 : i32, message = "bqd,bkd->bqk"}> : () -> ()
    %cst_12 = arith.constant dense<0.000000e+00> : vector<2x8x8xf32>
    %45 = tpu.matmul %40, %42, %cst_12 {dimension_numbers = #tpu.dot_dimension_numbers<[2], [2], [1], [1], [0, 0, 0, 1, 1, 1], [0], [0]>} : vector<2x8x8xf32>, vector<2x8x8xf32>, vector<2x8x8xf32> -> vector<2x8x8xf32>
    "tpu.trace_stop"() : () -> ()
    %cst_13 = arith.constant 0.353553385 : f32
    %46 = vector.broadcast %cst_13 : f32 to vector<2x8x8xf32>
    %47 = arith.mulf %45, %46 : vector<2x8x8xf32>
    %48 = vector.shape_cast %14 : vector<8x8xf32> to vector<1x8x8xf32>
    %49 = vector.broadcast %48 : vector<1x8x8xf32> to vector<2x8x8xf32>
    %50 = arith.addf %47, %49 : vector<2x8x8xf32>
    %cst_14 = arith.constant dense<0xFF800000> : vector<2x8xf32>
    %51 = vector.multi_reduction <maximumf>, %50, %cst_14 [2] : vector<2x8x8xf32> to vector<2x8xf32>
    %52 = vector.shape_cast %51 : vector<2x8xf32> to vector<2x8x1xf32>
    %53 = vector.broadcast %52 : vector<2x8x1xf32> to vector<2x8x8xf32>
    %54 = arith.subf %50, %53 : vector<2x8x8xf32>
    %55 = math.exp %54 : vector<2x8x8xf32>
    %cst_15 = arith.constant dense<0.000000e+00> : vector<2x8xf32>
    %56 = vector.multi_reduction <add>, %55, %cst_15 [2] : vector<2x8x8xf32> to vector<2x8xf32>
    %57 = vector.shape_cast %56 : vector<2x8xf32> to vector<2x8x1xf32>
    %58 = tpu.reciprocal %57 : vector<2x8x1xf32> -> vector<2x8x1xf32>
    %59 = vector.broadcast %58 : vector<2x8x1xf32> to vector<2x8x8xf32>
    %60 = arith.mulf %55, %59 : vector<2x8x8xf32>
    "tpu.trace_start"() <{level = 10 : i32, message = "bqk,bkd->bqd"}> : () -> ()
    %cst_16 = arith.constant dense<0.000000e+00> : vector<2x8x8xf32>
    %61 = tpu.matmul %60, %44, %cst_16 {dimension_numbers = #tpu.dot_dimension_numbers<[2], [1], [1], [2], [0, 0, 0, 1, 1, 2], [0], [0]>} : vector<2x8x8xf32>, vector<2x8x8xf32>, vector<2x8x8xf32> -> vector<2x8x8xf32>
    "tpu.trace_stop"() : () -> ()
    %62 = vector.shape_cast %61 : vector<2x8x8xf32> to vector<16x8xf32>
    %63 = vector.extract_strided_slice %6 {offsets = [0, 16], sizes = [16, 8], strides = [1, 1]} : vector<16x32xf32> to vector<16x8xf32>
    %64 = vector.shape_cast %63 : vector<16x8xf32> to vector<2x8x8xf32>
    %65 = vector.extract_strided_slice %7 {offsets = [0, 16], sizes = [16, 8], strides = [1, 1]} : vector<16x32xf32> to vector<16x8xf32>
    %66 = vector.shape_cast %65 : vector<16x8xf32> to vector<2x8x8xf32>
    %67 = vector.extract_strided_slice %8 {offsets = [0, 16], sizes = [16, 8], strides = [1, 1]} : vector<16x32xf32> to vector<16x8xf32>
    %68 = vector.shape_cast %67 : vector<16x8xf32> to vector<2x8x8xf32>
    "tpu.trace_start"() <{level = 10 : i32, message = "bqd,bkd->bqk"}> : () -> ()
    %cst_17 = arith.constant dense<0.000000e+00> : vector<2x8x8xf32>
    %69 = tpu.matmul %64, %66, %cst_17 {dimension_numbers = #tpu.dot_dimension_numbers<[2], [2], [1], [1], [0, 0, 0, 1, 1, 1], [0], [0]>} : vector<2x8x8xf32>, vector<2x8x8xf32>, vector<2x8x8xf32> -> vector<2x8x8xf32>
    "tpu.trace_stop"() : () -> ()
    %cst_18 = arith.constant 0.353553385 : f32
    %70 = vector.broadcast %cst_18 : f32 to vector<2x8x8xf32>
    %71 = arith.mulf %69, %70 : vector<2x8x8xf32>
    %72 = vector.shape_cast %14 : vector<8x8xf32> to vector<1x8x8xf32>
    %73 = vector.broadcast %72 : vector<1x8x8xf32> to vector<2x8x8xf32>
    %74 = arith.addf %71, %73 : vector<2x8x8xf32>
    %cst_19 = arith.constant dense<0xFF800000> : vector<2x8xf32>
    %75 = vector.multi_reduction <maximumf>, %74, %cst_19 [2] : vector<2x8x8xf32> to vector<2x8xf32>
    %76 = vector.shape_cast %75 : vector<2x8xf32> to vector<2x8x1xf32>
    %77 = vector.broadcast %76 : vector<2x8x1xf32> to vector<2x8x8xf32>
    %78 = arith.subf %74, %77 : vector<2x8x8xf32>
    %79 = math.exp %78 : vector<2x8x8xf32>
    %cst_20 = arith.constant dense<0.000000e+00> : vector<2x8xf32>
    %80 = vector.multi_reduction <add>, %79, %cst_20 [2] : vector<2x8x8xf32> to vector<2x8xf32>
    %81 = vector.shape_cast %80 : vector<2x8xf32> to vector<2x8x1xf32>
    %82 = tpu.reciprocal %81 : vector<2x8x1xf32> -> vector<2x8x1xf32>
    %83 = vector.broadcast %82 : vector<2x8x1xf32> to vector<2x8x8xf32>
    %84 = arith.mulf %79, %83 : vector<2x8x8xf32>
    "tpu.trace_start"() <{level = 10 : i32, message = "bqk,bkd->bqd"}> : () -> ()
    %cst_21 = arith.constant dense<0.000000e+00> : vector<2x8x8xf32>
    %85 = tpu.matmul %84, %68, %cst_21 {dimension_numbers = #tpu.dot_dimension_numbers<[2], [1], [1], [2], [0, 0, 0, 1, 1, 2], [0], [0]>} : vector<2x8x8xf32>, vector<2x8x8xf32>, vector<2x8x8xf32> -> vector<2x8x8xf32>
    "tpu.trace_stop"() : () -> ()
    %86 = vector.shape_cast %85 : vector<2x8x8xf32> to vector<16x8xf32>
    %87 = vector.extract_strided_slice %6 {offsets = [0, 24], sizes = [16, 8], strides = [1, 1]} : vector<16x32xf32> to vector<16x8xf32>
    %88 = vector.shape_cast %87 : vector<16x8xf32> to vector<2x8x8xf32>
    %89 = vector.extract_strided_slice %7 {offsets = [0, 24], sizes = [16, 8], strides = [1, 1]} : vector<16x32xf32> to vector<16x8xf32>
    %90 = vector.shape_cast %89 : vector<16x8xf32> to vector<2x8x8xf32>
    %91 = vector.extract_strided_slice %8 {offsets = [0, 24], sizes = [16, 8], strides = [1, 1]} : vector<16x32xf32> to vector<16x8xf32>
    %92 = vector.shape_cast %91 : vector<16x8xf32> to vector<2x8x8xf32>
    "tpu.trace_start"() <{level = 10 : i32, message = "bqd,bkd->bqk"}> : () -> ()
    %cst_22 = arith.constant dense<0.000000e+00> : vector<2x8x8xf32>
    %93 = tpu.matmul %88, %90, %cst_22 {dimension_numbers = #tpu.dot_dimension_numbers<[2], [2], [1], [1], [0, 0, 0, 1, 1, 1], [0], [0]>} : vector<2x8x8xf32>, vector<2x8x8xf32>, vector<2x8x8xf32> -> vector<2x8x8xf32>
    "tpu.trace_stop"() : () -> ()
    %cst_23 = arith.constant 0.353553385 : f32
    %94 = vector.broadcast %cst_23 : f32 to vector<2x8x8xf32>
    %95 = arith.mulf %93, %94 : vector<2x8x8xf32>
    %96 = vector.shape_cast %14 : vector<8x8xf32> to vector<1x8x8xf32>
    %97 = vector.broadcast %96 : vector<1x8x8xf32> to vector<2x8x8xf32>
    %98 = arith.addf %95, %97 : vector<2x8x8xf32>
    %cst_24 = arith.constant dense<0xFF800000> : vector<2x8xf32>
    %99 = vector.multi_reduction <maximumf>, %98, %cst_24 [2] : vector<2x8x8xf32> to vector<2x8xf32>
    %100 = vector.shape_cast %99 : vector<2x8xf32> to vector<2x8x1xf32>
    %101 = vector.broadcast %100 : vector<2x8x1xf32> to vector<2x8x8xf32>
    %102 = arith.subf %98, %101 : vector<2x8x8xf32>
    %103 = math.exp %102 : vector<2x8x8xf32>
    %cst_25 = arith.constant dense<0.000000e+00> : vector<2x8xf32>
    %104 = vector.multi_reduction <add>, %103, %cst_25 [2] : vector<2x8x8xf32> to vector<2x8xf32>
    %105 = vector.shape_cast %104 : vector<2x8xf32> to vector<2x8x1xf32>
    %106 = tpu.reciprocal %105 : vector<2x8x1xf32> -> vector<2x8x1xf32>
    %107 = vector.broadcast %106 : vector<2x8x1xf32> to vector<2x8x8xf32>
    %108 = arith.mulf %103, %107 : vector<2x8x8xf32>
    "tpu.trace_start"() <{level = 10 : i32, message = "bqk,bkd->bqd"}> : () -> ()
    %cst_26 = arith.constant dense<0.000000e+00> : vector<2x8x8xf32>
    %109 = tpu.matmul %108, %92, %cst_26 {dimension_numbers = #tpu.dot_dimension_numbers<[2], [1], [1], [2], [0, 0, 0, 1, 1, 2], [0], [0]>} : vector<2x8x8xf32>, vector<2x8x8xf32>, vector<2x8x8xf32> -> vector<2x8x8xf32>
    "tpu.trace_stop"() : () -> ()
    %110 = vector.shape_cast %109 : vector<2x8x8xf32> to vector<16x8xf32>
    %111 = tpu.concatenate %38, %62, %86, %110 in 1 : vector<16x8xf32>, vector<16x8xf32>, vector<16x8xf32>, vector<16x8xf32> -> vector<16x32xf32>
    %c0_27 = arith.constant 0 : index
    %c0_28 = arith.constant 0 : index
    %112 = vector.load %arg3[%c0_27, %c0_28] : memref<32x32xf32, #tpu.memory_space<vmem>>, vector<32x32xf32>
    %cst_29 = arith.constant dense<0.000000e+00> : vector<16x32xf32>
    %113 = tpu.matmul %111, %112, %cst_29 {dimension_numbers = #tpu.dot_dimension_numbers<[1], [0], [0], [1], [0, 0, 1, 1], [], []>} : vector<16x32xf32>, vector<32x32xf32>, vector<16x32xf32> -> vector<16x32xf32>
    %c0_30 = arith.constant 0 : index
    %c0_31 = arith.constant 0 : index
    %114 = vector.load %arg4[%c0_30, %c0_31] : memref<1x32xf32, #tpu.memory_space<vmem>>, vector<1x32xf32>
    %115 = vector.broadcast %114 : vector<1x32xf32> to vector<16x32xf32>
    %116 = arith.addf %113, %115 : vector<16x32xf32>
    %117 = arith.addf %0, %116 : vector<16x32xf32>
    %c0_32 = arith.constant 0 : index
    %c0_33 = arith.constant 0 : index
    %118 = vector.load %arg5[%c0_32, %c0_33] : memref<1x32xf32, #tpu.memory_space<vmem>>, vector<1x32xf32>
    %c0_34 = arith.constant 0 : index
    %c0_35 = arith.constant 0 : index
    %119 = vector.load %arg6[%c0_34, %c0_35] : memref<1x32xf32, #tpu.memory_space<vmem>>, vector<1x32xf32>
    %cst_36 = arith.constant dense<0.000000e+00> : vector<16xf32>
    %120 = vector.multi_reduction <add>, %117, %cst_36 [1] : vector<16x32xf32> to vector<16xf32>
    %121 = vector.shape_cast %120 : vector<16xf32> to vector<16x1xf32>
    %cst_37 = arith.constant 3.200000e+01 : f32
    %122 = vector.broadcast %cst_37 : f32 to vector<16x1xf32>
    %123 = arith.divf %121, %122 : vector<16x1xf32>
    %124 = vector.broadcast %123 : vector<16x1xf32> to vector<16x32xf32>
    %125 = arith.subf %117, %124 : vector<16x32xf32>
    %126 = arith.mulf %125, %125 : vector<16x32xf32>
    %cst_38 = arith.constant dense<0.000000e+00> : vector<16xf32>
    %127 = vector.multi_reduction <add>, %126, %cst_38 [1] : vector<16x32xf32> to vector<16xf32>
    %128 = vector.shape_cast %127 : vector<16xf32> to vector<16x1xf32>
    %cst_39 = arith.constant 3.200000e+01 : f32
    %129 = vector.broadcast %cst_39 : f32 to vector<16x1xf32>
    %130 = arith.divf %128, %129 : vector<16x1xf32>
    %131 = vector.broadcast %123 : vector<16x1xf32> to vector<16x32xf32>
    %132 = arith.subf %117, %131 : vector<16x32xf32>
    %cst_40 = arith.constant 9.99999974E-6 : f32
    %133 = vector.broadcast %cst_40 : f32 to vector<16x1xf32>
    %134 = arith.addf %130, %133 : vector<16x1xf32>
    %135 = math.rsqrt %134 : vector<16x1xf32>
    %136 = vector.broadcast %135 : vector<16x1xf32> to vector<16x32xf32>
    %137 = arith.mulf %132, %136 : vector<16x32xf32>
    %138 = vector.broadcast %118 : vector<1x32xf32> to vector<16x32xf32>
    %139 = arith.mulf %137, %138 : vector<16x32xf32>
    %140 = vector.broadcast %119 : vector<1x32xf32> to vector<16x32xf32>
    %141 = arith.addf %139, %140 : vector<16x32xf32>
    %c0_41 = arith.constant 0 : index
    %c0_42 = arith.constant 0 : index
    %142 = vector.load %arg7[%c0_41, %c0_42] : memref<32x64xf32, #tpu.memory_space<vmem>>, vector<32x64xf32>
    %cst_43 = arith.constant dense<0.000000e+00> : vector<16x64xf32>
    %143 = tpu.matmul %141, %142, %cst_43 {dimension_numbers = #tpu.dot_dimension_numbers<[1], [0], [0], [1], [0, 0, 1, 1], [], []>} : vector<16x32xf32>, vector<32x64xf32>, vector<16x64xf32> -> vector<16x64xf32>
    %c0_44 = arith.constant 0 : index
    %c0_45 = arith.constant 0 : index
    %144 = vector.load %arg8[%c0_44, %c0_45] : memref<1x64xf32, #tpu.memory_space<vmem>>, vector<1x64xf32>
    %145 = vector.broadcast %144 : vector<1x64xf32> to vector<16x64xf32>
    %146 = arith.addf %143, %145 : vector<16x64xf32>
    %cst_46 = arith.constant 0.000000e+00 : f32
    %147 = vector.broadcast %cst_46 : f32 to vector<16x64xf32>
    %148 = arith.maximumf %146, %147 : vector<16x64xf32>
    %c0_47 = arith.constant 0 : index
    %c0_48 = arith.constant 0 : index
    %149 = vector.load %arg9[%c0_47, %c0_48] : memref<64x32xf32, #tpu.memory_space<vmem>>, vector<64x32xf32>
    %cst_49 = arith.constant dense<0.000000e+00> : vector<16x32xf32>
    %150 = tpu.matmul %148, %149, %cst_49 {dimension_numbers = #tpu.dot_dimension_numbers<[1], [0], [0], [1], [0, 0, 1, 1], [], []>} : vector<16x64xf32>, vector<64x32xf32>, vector<16x32xf32> -> vector<16x32xf32>
    %c0_50 = arith.constant 0 : index
    %c0_51 = arith.constant 0 : index
    %151 = vector.load %arg10[%c0_50, %c0_51] : memref<1x32xf32, #tpu.memory_space<vmem>>, vector<1x32xf32>
    %152 = vector.broadcast %151 : vector<1x32xf32> to vector<16x32xf32>
    %153 = arith.addf %150, %152 : vector<16x32xf32>
    %154 = arith.addf %141, %153 : vector<16x32xf32>
    %c0_52 = arith.constant 0 : index
    %c0_53 = arith.constant 0 : index
    %155 = vector.load %arg11[%c0_52, %c0_53] : memref<1x32xf32, #tpu.memory_space<vmem>>, vector<1x32xf32>
    %c0_54 = arith.constant 0 : index
    %c0_55 = arith.constant 0 : index
    %156 = vector.load %arg12[%c0_54, %c0_55] : memref<1x32xf32, #tpu.memory_space<vmem>>, vector<1x32xf32>
    %cst_56 = arith.constant dense<0.000000e+00> : vector<16xf32>
    %157 = vector.multi_reduction <add>, %154, %cst_56 [1] : vector<16x32xf32> to vector<16xf32>
    %158 = vector.shape_cast %157 : vector<16xf32> to vector<16x1xf32>
    %cst_57 = arith.constant 3.200000e+01 : f32
    %159 = vector.broadcast %cst_57 : f32 to vector<16x1xf32>
    %160 = arith.divf %158, %159 : vector<16x1xf32>
    %161 = vector.broadcast %160 : vector<16x1xf32> to vector<16x32xf32>
    %162 = arith.subf %154, %161 : vector<16x32xf32>
    %163 = arith.mulf %162, %162 : vector<16x32xf32>
    %cst_58 = arith.constant dense<0.000000e+00> : vector<16xf32>
    %164 = vector.multi_reduction <add>, %163, %cst_58 [1] : vector<16x32xf32> to vector<16xf32>
    %165 = vector.shape_cast %164 : vector<16xf32> to vector<16x1xf32>
    %cst_59 = arith.constant 3.200000e+01 : f32
    %166 = vector.broadcast %cst_59 : f32 to vector<16x1xf32>
    %167 = arith.divf %165, %166 : vector<16x1xf32>
    %168 = vector.broadcast %160 : vector<16x1xf32> to vector<16x32xf32>
    %169 = arith.subf %154, %168 : vector<16x32xf32>
    %cst_60 = arith.constant 9.99999974E-6 : f32
    %170 = vector.broadcast %cst_60 : f32 to vector<16x1xf32>
    %171 = arith.addf %167, %170 : vector<16x1xf32>
    %172 = math.rsqrt %171 : vector<16x1xf32>
    %173 = vector.broadcast %172 : vector<16x1xf32> to vector<16x32xf32>
    %174 = arith.mulf %169, %173 : vector<16x32xf32>
    %175 = vector.broadcast %155 : vector<1x32xf32> to vector<16x32xf32>
    %176 = arith.mulf %174, %175 : vector<16x32xf32>
    %177 = vector.broadcast %156 : vector<1x32xf32> to vector<16x32xf32>
    %178 = arith.addf %176, %177 : vector<16x32xf32>
    %c0_61 = arith.constant 0 : index
    %c0_62 = arith.constant 0 : index
    %179 = vector.load %arg13[%c0_61, %c0_62] : memref<32x32xf32, #tpu.memory_space<vmem>>, vector<32x32xf32>
    %cst_63 = arith.constant dense<0.000000e+00> : vector<16x32xf32>
    %180 = tpu.matmul %178, %179, %cst_63 {dimension_numbers = #tpu.dot_dimension_numbers<[1], [0], [0], [1], [0, 0, 1, 1], [], []>} : vector<16x32xf32>, vector<32x32xf32>, vector<16x32xf32> -> vector<16x32xf32>
    %c0_64 = arith.constant 0 : index
    %c0_65 = arith.constant 0 : index
    %181 = vector.load %arg14[%c0_64, %c0_65] : memref<1x32xf32, #tpu.memory_space<vmem>>, vector<1x32xf32>
    %182 = vector.broadcast %181 : vector<1x32xf32> to vector<16x32xf32>
    %183 = arith.addf %180, %182 : vector<16x32xf32>
    %184 = vector.shape_cast %183 : vector<16x32xf32> to vector<2x8x32xf32>
    %cst_66 = arith.constant dense<0xFF800000> : vector<8x32xf32>
    %185 = vector.multi_reduction <maximumf>, %184, %cst_66 [0] : vector<2x8x32xf32> to vector<8x32xf32>
    %186 = vector.shape_cast %185 : vector<8x32xf32> to vector<1x8x32xf32>
    %187 = vector.broadcast %186 : vector<1x8x32xf32> to vector<2x8x32xf32>
    %188 = arith.subf %184, %187 : vector<2x8x32xf32>
    %189 = math.exp %188 : vector<2x8x32xf32>
    %cst_67 = arith.constant dense<0.000000e+00> : vector<8x32xf32>
    %190 = vector.multi_reduction <add>, %189, %cst_67 [0] : vector<2x8x32xf32> to vector<8x32xf32>
    %191 = math.log %190 : vector<8x32xf32>
    %192 = arith.addf %191, %185 : vector<8x32xf32>
    %193 = vector.shape_cast %192 : vector<8x32xf32> to vector<1x8x32xf32>
    %194 = vector.broadcast %193 : vector<1x8x32xf32> to vector<2x8x32xf32>
    %195 = arith.subf %184, %194 : vector<2x8x32xf32>
    %c0_68 = arith.constant 0 : index
    %c0_69 = arith.constant 0 : index
    %c0_70 = arith.constant 0 : index
    %196 = vector.load %arg15[%c0_68, %c0_69, %c0_70] : memref<2x8x32xf32, #tpu.memory_space<vmem>>, vector<2x8x32xf32>
    tpu.vector_store %arg15[%c0_68, %c0_69, %c0_70], %195 {strides = array<i32>} : memref<2x8x32xf32, #tpu.memory_space<vmem>>, vector<2x8x32xf32>,
    return
  }
}

</mosaic_0001>

<llo_original>
// kernel: tpu_custom_call.1
$region0: #{tpu_custom_call.1}
  #allocation0 [shape = 'u32[]', space=smem, size = 0x4, offset = 0x4, fixed_abs, tag = 'smem constant byte address 0x4 - core index']
  #allocation1 [shape = 'u32[144,128]{1,0:T(1,128)}', space=vmem, size = 0x12000, scoped, tag = 'internal scratch']
  %s0 = inlined_call_operand.hbm [shape: f32[16,32], index: 0, kind: input, shape index: {}]
  %s1 = inlined_call_operand.vmem [shape: f32[32,96], index: 1, kind: input, shape index: {}]
  %s2 = inlined_call_operand.vmem [shape: f32[1,96], index: 2, kind: input, shape index: {}]
  %s3 = inlined_call_operand.vmem [shape: f32[32,32], index: 3, kind: input, shape index: {}]
  %s4 = inlined_call_operand.vmem [shape: f32[1,32], index: 4, kind: input, shape index: {}]
  %s5 = inlined_call_operand.vmem [shape: f32[1,32], index: 5, kind: input, shape index: {}]
  %s6 = inlined_call_operand.vmem [shape: f32[1,32], index: 6, kind: input, shape index: {}]
  %s7 = inlined_call_operand.vmem [shape: f32[32,64], index: 7, kind: input, shape index: {}]
  %s8 = inlined_call_operand.vmem [shape: f32[1,64], index: 8, kind: input, shape index: {}]
  %s9 = inlined_call_operand.vmem [shape: f32[64,32], index: 9, kind: input, shape index: {}]
  %s10 = inlined_call_operand.vmem [shape: f32[1,32], index: 10, kind: input, shape index: {}]
  %s11 = inlined_call_operand.vmem [shape: f32[1,32], index: 11, kind: input, shape index: {}]
  %s12 = inlined_call_operand.vmem [shape: f32[1,32], index: 12, kind: input, shape index: {}]
  %s13 = inlined_call_operand.hbm [shape: f32[32,32], index: 13, kind: input, shape index: {}]
  %s14 = inlined_call_operand.vmem [shape: f32[1,32], index: 14, kind: input, shape index: {}]
  %s15 = inlined_call_operand.hbm [shape: f32[2,8,32], index: 15, kind: output, shape index: {}]
  %s16 = sld [smem:[#allocation0]]
  $region78: #{tpu_custom_call.1} parent=0
    _
  %s18 = ssub.s32 1, %s16
  %s19 = scalar_select 0, %s18, %s16
  $region1: #{tpu_custom_call.1} parent=0
    #allocation2 [shape = 'u8[8192]{0}', space=vmem, size = 0x2000, scoped, tag = 'input window, operand 0, single buffered']
    #allocation3 [shape = 's32[1]{0}', space=sflag, size = 0x4, scoped, tag = 'scoped memory for tpu_custom_call.1']
    #allocation4 [shape = 's32[1]{0}', space=sflag, size = 0x4, scoped, tag = 'scoped memory for tpu_custom_call.1']
    #allocation5 [shape = 'u8[16384]{0}', space=vmem, size = 0x4000, scoped, tag = 'input window, operand 13, single buffered']
    #allocation6 [shape = 's32[1]{0}', space=sflag, size = 0x4, scoped, tag = 'scoped memory for tpu_custom_call.1']
    #allocation7 [shape = 'u8[8192]{0}', space=vmem, size = 0x2000, scoped, tag = 'output window, operand 0, single buffered']
    %20 = vsyncpa [#allocation3], 0
    %21 = vsyncpa [#allocation6], 0
    %22 = vsyncpa [#allocation4], 0
    // Predicated region
    $region2: #{tpu_custom_call.1} parent=1 // pred_check
      _
    $region3: #{tpu_custom_call.1} parent=1 // pred_check_branch
      %24 = sbr.rel (0) target = $region5
    $region4: #{tpu_custom_call.1} parent=1 // pred_region
      %s26 = ssub.s32 256, 256
      %27 = vsyncadd [#allocation3], %s26
      %s28 = sshll.u32 [#allocation2], 4
      %s29 = int_to_ptr.vmem [resolvable:$true] %s28
      %34 = dma.hbm_to_vmem [thread:$0]  %s0, 256, %s29, [#allocation3], 128, 128, 8
    $region5: #{tpu_custom_call.1} parent=1 // pred_fallthru
      _
    // Predicated region
    $region6: #{tpu_custom_call.1} parent=1 // pred_check
      _
    $region7: #{tpu_custom_call.1} parent=1 // pred_check_branch
      %36 = sbr.rel (0) target = $region9
    $region8: #{tpu_custom_call.1} parent=1 // pred_region
      _
    $region9: #{tpu_custom_call.1} parent=1 // pred_fallthru
      _
    // Predicated region
    $region10: #{tpu_custom_call.1} parent=1 // pred_check
      _
    $region11: #{tpu_custom_call.1} parent=1 // pred_check_branch
      %38 = sbr.rel (0) target = $region13
    $region12: #{tpu_custom_call.1} parent=1 // pred_region
      _
    $region13: #{tpu_custom_call.1} parent=1 // pred_fallthru
      _
    // Predicated region
    $region14: #{tpu_custom_call.1} parent=1 // pred_check
      _
    $region15: #{tpu_custom_call.1} parent=1 // pred_check_branch
      %40 = sbr.rel (0) target = $region17
    $region16: #{tpu_custom_call.1} parent=1 // pred_region
      _
    $region17: #{tpu_custom_call.1} parent=1 // pred_fallthru
      _
    // Predicated region
    $region18: #{tpu_custom_call.1} parent=1 // pred_check
      _
    $region19: #{tpu_custom_call.1} parent=1 // pred_check_branch
      %42 = sbr.rel (0) target = $region21
    $region20: #{tpu_custom_call.1} parent=1 // pred_region
      _
    $region21: #{tpu_custom_call.1} parent=1 // pred_fallthru
      _
    // Predicated region
    $region22: #{tpu_custom_call.1} parent=1 // pred_check
      _
    $region23: #{tpu_custom_call.1} parent=1 // pred_check_branch
      %44 = sbr.rel (0) target = $region25
    $region24: #{tpu_custom_call.1} parent=1 // pred_region
      _
    $region25: #{tpu_custom_call.1} parent=1 // pred_fallthru
      _
    // Predicated region
    $region26: #{tpu_custom_call.1} parent=1 // pred_check
      _
    $region27: #{tpu_custom_call.1} parent=1 // pred_check_branch
      %46 = sbr.rel (0) target = $region29
    $region28: #{tpu_custom_call.1} parent=1 // pred_region
      _
    $region29: #{tpu_custom_call.1} parent=1 // pred_fallthru
      _
    // Predicated region
    $region30: #{tpu_custom_call.1} parent=1 // pred_check
      _
    $region31: #{tpu_custom_call.1} parent=1 // pred_check_branch
      %48 = sbr.rel (0) target = $region33
    $region32: #{tpu_custom_call.1} parent=1 // pred_region
      _
    $region33: #{tpu_custom_call.1} parent=1 // pred_fallthru
      _
    // Predicated region
    $region34: #{tpu_custom_call.1} parent=1 // pred_check
      _
    $region35: #{tpu_custom_call.1} parent=1 // pred_check_branch
      %50 = sbr.rel (0) target = $region37
    $region36: #{tpu_custom_call.1} parent=1 // pred_region
      _
    $region37: #{tpu_custom_call.1} parent=1 // pred_fallthru
      _
    // Predicated region
    $region38: #{tpu_custom_call.1} parent=1 // pred_check
      _
    $region39: #{tpu_custom_call.1} parent=1 // pred_check_branch
      %52 = sbr.rel (0) target = $region41
    $region40: #{tpu_custom_call.1} parent=1 // pred_region
      _
    $region41: #{tpu_custom_call.1} parent=1 // pred_fallthru
      _
    // Predicated region
    $region42: #{tpu_custom_call.1} parent=1 // pred_check
      _
    $region43: #{tpu_custom_call.1} parent=1 // pred_check_branch
      %54 = sbr.rel (0) target = $region45
    $region44: #{tpu_custom_call.1} parent=1 // pred_region
      _
    $region45: #{tpu_custom_call.1} parent=1 // pred_fallthru
      _
    // Predicated region
    $region46: #{tpu_custom_call.1} parent=1 // pred_check
      _
    $region47: #{tpu_custom_call.1} parent=1 // pred_check_branch
      %56 = sbr.rel (0) target = $region49
    $region48: #{tpu_custom_call.1} parent=1 // pred_region
      _
    $region49: #{tpu_custom_call.1} parent=1 // pred_fallthru
      _
    // Predicated region
    $region50: #{tpu_custom_call.1} parent=1 // pred_check
      _
    $region51: #{tpu_custom_call.1} parent=1 // pred_check_branch
      %58 = sbr.rel (0) target = $region53
    $region52: #{tpu_custom_call.1} parent=1 // pred_region
      _
    $region53: #{tpu_custom_call.1} parent=1 // pred_fallthru
      _
    // Predicated region
    $region54: #{tpu_custom_call.1} parent=1 // pred_check
      _
    $region55: #{tpu_custom_call.1} parent=1 // pred_check_branch
      %60 = sbr.rel (0) target = $region57
    $region56: #{tpu_custom_call.1} parent=1 // pred_region
      %s62 = ssub.s32 512, 512
      %63 = vsyncadd [#allocation6], %s62
      %s64 = sshll.u32 [#allocation5], 4
      %s65 = int_to_ptr.vmem [resolvable:$true] %s64
      %70 = dma.hbm_to_vmem [thread:$0]  %s13, 512, %s65, [#allocation6], 128, 128, 8
    $region57: #{tpu_custom_call.1} parent=1 // pred_fallthru
      _
    // Predicated region
    $region58: #{tpu_custom_call.1} parent=1 // pred_check
      _
    $region59: #{tpu_custom_call.1} parent=1 // pred_check_branch
      %72 = sbr.rel (0) target = $region61
    $region60: #{tpu_custom_call.1} parent=1 // pred_region
      _
    $region61: #{tpu_custom_call.1} parent=1 // pred_fallthru
      _
    // Predicated region
    $region62: #{tpu_custom_call.1} parent=1 // pred_check
      _
    $region63: #{tpu_custom_call.1} parent=1 // pred_check_branch
      %74 = sbr.rel (0) target = $region65
    $region64: #{tpu_custom_call.1} parent=1 // pred_region
      %75 = dma.done [#allocation3], 256
    $region65: #{tpu_custom_call.1} parent=1 // pred_fallthru
      _
    // Predicated region
    $region66: #{tpu_custom_call.1} parent=1 // pred_check
      _
    $region67: #{tpu_custom_call.1} parent=1 // pred_check_branch
      %77 = sbr.rel (0) target = $region69
    $region68: #{tpu_custom_call.1} parent=1 // pred_region
      %78 = dma.done [#allocation6], 512
    $region69: #{tpu_custom_call.1} parent=1 // pred_fallthru
      _
    %v79 = vld [vmem:[#allocation2] sm:$0xff]
    %v80 = vld [vmem:[#allocation2 + $0x8] sm:$0xff]
    %v81 = vld [vmem:[%s1] sm:$0xff]
    %v82 = vld [vmem:[%s1 + $0x8] sm:$0xff]
    %v83 = vld [vmem:[%s1 + $0x10] sm:$0xff]
    %v84 = vld [vmem:[%s1 + $0x18] sm:$0xff]
    %v85 = vld [vmem:[%s2] sm:$0x1]
    %v87 = vlaneseq
    %v88 = vshrl.u32 %v87, 7
    %v89 = vsub.s32 0, %v88
    %v90 = vrot.slane %v85, %v89
    %vm92 = vcmask 261120
    %v94 = vsel %vm92, %v79, 0
    %v97 = vsel %vm92, %v80, 0
    %99 = vmatprep.subr.mxu0 0.0
    %100 = vmatpush1.msra.mxu0 0.0
    %101 = vmatprep.subr.mxu0 0.0
    %102 = vmatpush1.msra.mxu0 0.0
    %103 = vmatprep.subr.mxu0 0.0
    %104 = vmatpush1.msra.mxu0 0.0
    %105 = vmatprep.subr.mxu0 0.0
    %106 = vmatpush1.msra.mxu0 0.0
    %107 = vmatprep.subr.mxu0 0.0
    %108 = vmatpush1.msra.mxu0 0.0
    %109 = vmatprep.subr.mxu0 0.0
    %110 = vmatpush1.msra.mxu0 0.0
    %111 = vmatprep.subr.mxu0 0.0
    %112 = vmatpush1.msra.mxu0 0.0
    %113 = vmatprep.subr.mxu0 0.0
    %114 = vmatpush1.msra.mxu0 0.0
    %115 = vmatprep.subr.mxu0 0.0
    %116 = vmatpush1.msra.mxu0 0.0
    %117 = vmatprep.subr.mxu0 0.0
    %118 = vmatpush1.msra.mxu0 0.0
    %119 = vmatprep.subr.mxu0 0.0
    %120 = vmatpush1.msra.mxu0 0.0
    %121 = vmatprep.subr.mxu0 0.0
    %122 = vmatpush1.msra.mxu0 0.0
    %123 = vmatprep.subr.mxu0 0.0
    %124 = vmatpush1.msra.mxu0 %v84
    %125 = vmatprep.subr.mxu0 0.0
    %126 = vmatpush1.msra.mxu0 %v83
    %127 = vmatprep.subr.mxu0 0.0
    %128 = vmatpush1.msra.mxu0 %v82
    %129 = vmatprep.subr.mxu0 0.0
    %130 = vmatpush1.msra.mxu0 %v81
    %131 = vmatprep.subr.mxu0 0.0
    %132 = vmatpush2.msra.mxu0 0.0
    %133 = vmatprep.subr.mxu0 0.0
    %134 = vmatpush2.msra.mxu0 0.0
    %135 = vmatprep.subr.mxu0 0.0
    %136 = vmatpush2.msra.mxu0 0.0
    %137 = vmatprep.subr.mxu0 0.0
    %138 = vmatpush2.msra.mxu0 0.0
    %139 = vmatprep.subr.mxu0 0.0
    %140 = vmatpush2.msra.mxu0 0.0
    %141 = vmatprep.subr.mxu0 0.0
    %142 = vmatpush2.msra.mxu0 0.0
    %143 = vmatprep.subr.mxu0 0.0
    %144 = vmatpush2.msra.mxu0 0.0
    %145 = vmatprep.subr.mxu0 0.0
    %146 = vmatpush2.msra.mxu0 0.0
    %147 = vmatprep.subr.mxu0 0.0
    %148 = vmatpush2.msra.mxu0 0.0
    %149 = vmatprep.subr.mxu0 0.0
    %150 = vmatpush2.msra.mxu0 0.0
    %151 = vmatprep.subr.mxu0 0.0
    %152 = vmatpush2.msra.mxu0 0.0
    %153 = vmatprep.subr.mxu0 0.0
    %154 = vmatpush2.msra.mxu0 0.0
    %155 = vmatprep.subr.mxu0 0.0
    %156 = vmatpush2.msra.mxu0 0.0
    %157 = vmatprep.subr.mxu0 0.0
    %158 = vmatpush2.msra.mxu0 0.0
    %159 = vmatprep.subr.mxu0 0.0
    %160 = vmatpush2.msra.mxu0 0.0
    %161 = vmatprep.subr.mxu0 0.0
    %162 = vmatpush2.msra.mxu0 0.0
    %163 = vmatprep.mubr.f32.mxu0 0.0
    %164 = vmatmul.mubr.f32.gmra.mxu0 %v94
    %v165 = vpop.f32.mrf.mxu0
    %v166 = vadd.f32 %v90, %v165
    %v167 = vpop.f32.mrf.mxu0
    %168 = vmatprep.mubr.f32.mxu0 0.0
    %169 = vmatmul.mubr.f32.gmra.mxu0 %v97
    %v170 = vpop.f32.mrf.mxu0
    %v171 = vadd.f32 %v90, %v170
    %v172 = vpop.f32.mrf.mxu0
    %173 = vdwg.mxu0
    %v174 = vlaneseq
    %v175 = vshrl.u32 %v174, 7
    %v176 = vlaneseq
    %v177 = vand.u32 %v176, 127
    %vm178 = vcmp.le.s32.totalorder %v177, %v175
    %v179 = vsel %vm178, 0.0, -1e+30
    %181 = vrot.lane.b32.xlu0 %v166, 96
    %v182 = vpop.permute.xlu0 %181
    %vm183 = vcmask 64512
    %v184 = vsel %vm183, %v166, 0
    %v186 = vsel %vm183, %v182, 0
    %188 = vmatprep.subr.mxu0 0.0
    %189 = vmatpush1.xpose.msra.mxu0 0.0
    %190 = vmatprep.subr.mxu0 0.0
    %191 = vmatpush1.xpose.msra.mxu0 0.0
    %192 = vmatprep.subr.mxu0 0.0
    %193 = vmatpush1.xpose.msra.mxu0 0.0
    %194 = vmatprep.subr.mxu0 0.0
    %195 = vmatpush1.xpose.msra.mxu0 0.0
    %196 = vmatprep.subr.mxu0 0.0
    %197 = vmatpush1.xpose.msra.mxu0 0.0
    %198 = vmatprep.subr.mxu0 0.0
    %199 = vmatpush1.xpose.msra.mxu0 0.0
    %200 = vmatprep.subr.mxu0 0.0
    %201 = vmatpush1.xpose.msra.mxu0 0.0
    %202 = vmatprep.subr.mxu0 0.0
    %203 = vmatpush1.xpose.msra.mxu0 0.0
    %204 = vmatprep.subr.mxu0 0.0
    %205 = vmatpush1.xpose.msra.mxu0 0.0
    %206 = vmatprep.subr.mxu0 0.0
    %207 = vmatpush1.xpose.msra.mxu0 0.0
    %208 = vmatprep.subr.mxu0 0.0
    %209 = vmatpush1.xpose.msra.mxu0 0.0
    %210 = vmatprep.subr.mxu0 0.0
    %211 = vmatpush1.xpose.msra.mxu0 0.0
    %212 = vmatprep.subr.mxu0 0.0
    %213 = vmatpush1.xpose.msra.mxu0 0.0
    %214 = vmatprep.subr.mxu0 0.0
    %215 = vmatpush1.xpose.msra.mxu0 0.0
    %216 = vmatprep.subr.mxu0 0.0
    %217 = vmatpush1.xpose.msra.mxu0 0.0
    %218 = vmatprep.subr.mxu0 0.0
    %219 = vmatpush1.xpose.msra.mxu0 %v186
    %220 = vmatprep.subr.mxu0 0.0
    %221 = vmatpush2.xpose.msra.mxu0 0.0
    %222 = vmatprep.subr.mxu0 0.0
    %223 = vmatpush2.xpose.msra.mxu0 0.0
    %224 = vmatprep.subr.mxu0 0.0
    %225 = vmatpush2.xpose.msra.mxu0 0.0
    %226 = vmatprep.subr.mxu0 0.0
    %227 = vmatpush2.xpose.msra.mxu0 0.0
    %228 = vmatprep.subr.mxu0 0.0
    %229 = vmatpush2.xpose.msra.mxu0 0.0
    %230 = vmatprep.subr.mxu0 0.0
    %231 = vmatpush2.xpose.msra.mxu0 0.0
    %232 = vmatprep.subr.mxu0 0.0
    %233 = vmatpush2.xpose.msra.mxu0 0.0
    %234 = vmatprep.subr.mxu0 0.0
    %235 = vmatpush2.xpose.msra.mxu0 0.0
    %236 = vmatprep.subr.mxu0 0.0
    %237 = vmatpush2.xpose.msra.mxu0 0.0
    %238 = vmatprep.subr.mxu0 0.0
    %239 = vmatpush2.xpose.msra.mxu0 0.0
    %240 = vmatprep.subr.mxu0 0.0
    %241 = vmatpush2.xpose.msra.mxu0 0.0
    %242 = vmatprep.subr.mxu0 0.0
    %243 = vmatpush2.xpose.msra.mxu0 0.0
    %244 = vmatprep.subr.mxu0 0.0
    %245 = vmatpush2.xpose.msra.mxu0 0.0
    %246 = vmatprep.subr.mxu0 0.0
    %247 = vmatpush2.xpose.msra.mxu0 0.0
    %248 = vmatprep.subr.mxu0 0.0
    %249 = vmatpush2.xpose.msra.mxu0 0.0
    %250 = vmatprep.subr.mxu0 0.0
    %251 = vmatpush2.xpose.msra.mxu0 0.0
    %252 = vmatprep.mubr.f32.mxu0 0.0
    %253 = vmatmul.mubr.f32.gmra.mxu0 %v184
    %v254 = vpop.f32.mrf.mxu0
    %v255 = vadd.f32 0.0, %v254
    %v256 = vpop.f32.mrf.mxu0
    %257 = vdwg.mxu0
    %259 = vrot.lane.b32.xlu0 %v171, 96
    %v260 = vpop.permute.xlu0 %259
    %v261 = vsel %vm183, %v171, 0
    %v263 = vsel %vm183, %v260, 0
    %265 = vmatprep.subr.mxu0 0.0
    %266 = vmatpush1.xpose.msra.mxu0 0.0
    %267 = vmatprep.subr.mxu0 0.0
    %268 = vmatpush1.xpose.msra.mxu0 0.0
    %269 = vmatprep.subr.mxu0 0.0
    %270 = vmatpush1.xpose.msra.mxu0 0.0
    %271 = vmatprep.subr.mxu0 0.0
    %272 = vmatpush1.xpose.msra.mxu0 0.0
    %273 = vmatprep.subr.mxu0 0.0
    %274 = vmatpush1.xpose.msra.mxu0 0.0
    %275 = vmatprep.subr.mxu0 0.0
    %276 = vmatpush1.xpose.msra.mxu0 0.0
    %277 = vmatprep.subr.mxu0 0.0
    %278 = vmatpush1.xpose.msra.mxu0 0.0
    %279 = vmatprep.subr.mxu0 0.0
    %280 = vmatpush1.xpose.msra.mxu0 0.0
    %281 = vmatprep.subr.mxu0 0.0
    %282 = vmatpush1.xpose.msra.mxu0 0.0
    %283 = vmatprep.subr.mxu0 0.0
    %284 = vmatpush1.xpose.msra.mxu0 0.0
    %285 = vmatprep.subr.mxu0 0.0
    %286 = vmatpush1.xpose.msra.mxu0 0.0
    %287 = vmatprep.subr.mxu0 0.0
    %288 = vmatpush1.xpose.msra.mxu0 0.0
    %289 = vmatprep.subr.mxu0 0.0
    %290 = vmatpush1.xpose.msra.mxu0 0.0
    %291 = vmatprep.subr.mxu0 0.0
    %292 = vmatpush1.xpose.msra.mxu0 0.0
    %293 = vmatprep.subr.mxu0 0.0
    %294 = vmatpush1.xpose.msra.mxu0 0.0
    %295 = vmatprep.subr.mxu0 0.0
    %296 = vmatpush1.xpose.msra.mxu0 %v263
    %297 = vmatprep.subr.mxu0 0.0
    %298 = vmatpush2.xpose.msra.mxu0 0.0
    %299 = vmatprep.subr.mxu0 0.0
    %300 = vmatpush2.xpose.msra.mxu0 0.0
    %301 = vmatprep.subr.mxu0 0.0
    %302 = vmatpush2.xpose.msra.mxu0 0.0
    %303 = vmatprep.subr.mxu0 0.0
    %304 = vmatpush2.xpose.msra.mxu0 0.0
    %305 = vmatprep.subr.mxu0 0.0
    %306 = vmatpush2.xpose.msra.mxu0 0.0
    %307 = vmatprep.subr.mxu0 0.0
    %308 = vmatpush2.xpose.msra.mxu0 0.0
    %309 = vmatprep.subr.mxu0 0.0
    %310 = vmatpush2.xpose.msra.mxu0 0.0
    %311 = vmatprep.subr.mxu0 0.0
    %312 = vmatpush2.xpose.msra.mxu0 0.0
    %313 = vmatprep.subr.mxu0 0.0
    %314 = vmatpush2.xpose.msra.mxu0 0.0
    %315 = vmatprep.subr.mxu0 0.0
    %316 = vmatpush2.xpose.msra.mxu0 0.0
    %317 = vmatprep.subr.mxu0 0.0
    %318 = vmatpush2.xpose.msra.mxu0 0.0
    %319 = vmatprep.subr.mxu0 0.0
    %320 = vmatpush2.xpose.msra.mxu0 0.0
    %321 = vmatprep.subr.mxu0 0.0
    %322 = vmatpush2.xpose.msra.mxu0 0.0
    %323 = vmatprep.subr.mxu0 0.0
    %324 = vmatpush2.xpose.msra.mxu0 0.0
    %325 = vmatprep.subr.mxu0 0.0
    %326 = vmatpush2.xpose.msra.mxu0 0.0
    %327 = vmatprep.subr.mxu0 0.0
    %328 = vmatpush2.xpose.msra.mxu0 0.0
    %329 = vmatprep.mubr.f32.mxu0 0.0
    %330 = vmatmul.mubr.f32.gmra.mxu0 %v261
    %v331 = vpop.f32.mrf.mxu0
    %v332 = vadd.f32 0.0, %v331
    %v333 = vpop.f32.mrf.mxu0
    %334 = vdwg.mxu0
    %v335 = vmul.f32 %v255, 0.35355338
    %v336 = vmul.f32 %v332, 0.35355338
    %v337 = vadd.f32 %v335, %v179
    %v338 = vadd.f32 %v336, %v179
    %v339 = vsel %vm183, %v337, -inf
    %340 = vmax.xlane.f32.xlu0 %v339
    %v341 = vpop.xlane.xlu0 %340
    %v342 = vsel %vm183, %v338, -inf
    %343 = vmax.xlane.f32.xlu0 %v342
    %v344 = vpop.xlane.xlu0 %343
    %v345 = vsub.f32 %v337, %v341
    %v346 = vsub.f32 %v338, %v344
    %v347 = vmul.f32 %v345, 1.442695
    %v348 = vpow.pop %v347
    %v349 = vmul.f32 %v346, 1.442695
    %v350 = vpow.pop %v349
    %v351 = vsel %vm183, %v348, 0.0
    %352 = vadd.xlane.f32.xlu0 %v351
    %v353 = vpop.xlane.xlu0 %352
    %v354 = vsel %vm183, %v350, 0.0
    %355 = vadd.xlane.f32.xlu0 %v354
    %v356 = vpop.xlane.xlu0 %355
    %v357 = vrcp.pop %v353
    %v358 = vrcp.pop %v356
    %v359 = vmul.f32 %v348, %v357
    %v360 = vmul.f32 %v350, %v358
    %361 = vrot.lane.b32.xlu0 %v166, 64
    %v362 = vpop.permute.xlu0 %361
    %v365 = vsel %vm183, %v359, 0
    %367 = vmatprep.subr.mxu0 0.0
    %368 = vmatpush1.msra.mxu0 0.0
    %369 = vmatprep.subr.mxu0 0.0
    %370 = vmatpush1.msra.mxu0 0.0
    %371 = vmatprep.subr.mxu0 0.0
    %372 = vmatpush1.msra.mxu0 0.0
    %373 = vmatprep.subr.mxu0 0.0
    %374 = vmatpush1.msra.mxu0 0.0
    %375 = vmatprep.subr.mxu0 0.0
    %376 = vmatpush1.msra.mxu0 0.0
    %377 = vmatprep.subr.mxu0 0.0
    %378 = vmatpush1.msra.mxu0 0.0
    %379 = vmatprep.subr.mxu0 0.0
    %380 = vmatpush1.msra.mxu0 0.0
    %381 = vmatprep.subr.mxu0 0.0
    %382 = vmatpush1.msra.mxu0 0.0
    %383 = vmatprep.subr.mxu0 0.0
    %384 = vmatpush1.msra.mxu0 0.0
    %385 = vmatprep.subr.mxu0 0.0
    %386 = vmatpush1.msra.mxu0 0.0
    %387 = vmatprep.subr.mxu0 0.0
    %388 = vmatpush1.msra.mxu0 0.0
    %389 = vmatprep.subr.mxu0 0.0
    %390 = vmatpush1.msra.mxu0 0.0
    %391 = vmatprep.subr.mxu0 0.0
    %392 = vmatpush1.msra.mxu0 0.0
    %393 = vmatprep.subr.mxu0 0.0
    %394 = vmatpush1.msra.mxu0 0.0
    %395 = vmatprep.subr.mxu0 0.0
    %396 = vmatpush1.msra.mxu0 0.0
    %397 = vmatprep.subr.mxu0 0.0
    %398 = vmatpush1.msra.mxu0 %v362
    %399 = vmatprep.subr.mxu0 0.0
    %400 = vmatpush2.msra.mxu0 0.0
    %401 = vmatprep.subr.mxu0 0.0
    %402 = vmatpush2.msra.mxu0 0.0
    %403 = vmatprep.subr.mxu0 0.0
    %404 = vmatpush2.msra.mxu0 0.0
    %405 = vmatprep.subr.mxu0 0.0
    %406 = vmatpush2.msra.mxu0 0.0
    %407 = vmatprep.subr.mxu0 0.0
    %408 = vmatpush2.msra.mxu0 0.0
    %409 = vmatprep.subr.mxu0 0.0
    %410 = vmatpush2.msra.mxu0 0.0
    %411 = vmatprep.subr.mxu0 0.0
    %412 = vmatpush2.msra.mxu0 0.0
    %413 = vmatprep.subr.mxu0 0.0
    %414 = vmatpush2.msra.mxu0 0.0
    %415 = vmatprep.subr.mxu0 0.0
    %416 = vmatpush2.msra.mxu0 0.0
    %417 = vmatprep.subr.mxu0 0.0
    %418 = vmatpush2.msra.mxu0 0.0
    %419 = vmatprep.subr.mxu0 0.0
    %420 = vmatpush2.msra.mxu0 0.0
    %421 = vmatprep.subr.mxu0 0.0
    %422 = vmatpush2.msra.mxu0 0.0
    %423 = vmatprep.subr.mxu0 0.0
    %424 = vmatpush2.msra.mxu0 0.0
    %425 = vmatprep.subr.mxu0 0.0
    %426 = vmatpush2.msra.mxu0 0.0
    %427 = vmatprep.subr.mxu0 0.0
    %428 = vmatpush2.msra.mxu0 0.0
    %429 = vmatprep.subr.mxu0 0.0
    %430 = vmatpush2.msra.mxu0 0.0
    %431 = vmatprep.mubr.f32.mxu0 0.0
    %432 = vmatmul.mubr.f32.gmra.mxu0 %v365
    %v433 = vpop.f32.mrf.mxu0
    %v434 = vadd.f32 0.0, %v433
    %v435 = vpop.f32.mrf.mxu0
    %436 = vdwg.mxu0
    %437 = vrot.lane.b32.xlu0 %v171, 64
    %v438 = vpop.permute.xlu0 %437
    %v441 = vsel %vm183, %v360, 0
    %443 = vmatprep.subr.mxu0 0.0
    %444 = vmatpush1.msra.mxu0 0.0
    %445 = vmatprep.subr.mxu0 0.0
    %446 = vmatpush1.msra.mxu0 0.0
    %447 = vmatprep.subr.mxu0 0.0
    %448 = vmatpush1.msra.mxu0 0.0
    %449 = vmatprep.subr.mxu0 0.0
    %450 = vmatpush1.msra.mxu0 0.0
    %451 = vmatprep.subr.mxu0 0.0
    %452 = vmatpush1.msra.mxu0 0.0
    %453 = vmatprep.subr.mxu0 0.0
    %454 = vmatpush1.msra.mxu0 0.0
    %455 = vmatprep.subr.mxu0 0.0
    %456 = vmatpush1.msra.mxu0 0.0
    %457 = vmatprep.subr.mxu0 0.0
    %458 = vmatpush1.msra.mxu0 0.0
    %459 = vmatprep.subr.mxu0 0.0
    %460 = vmatpush1.msra.mxu0 0.0
    %461 = vmatprep.subr.mxu0 0.0
    %462 = vmatpush1.msra.mxu0 0.0
    %463 = vmatprep.subr.mxu0 0.0
    %464 = vmatpush1.msra.mxu0 0.0
    %465 = vmatprep.subr.mxu0 0.0
    %466 = vmatpush1.msra.mxu0 0.0
    %467 = vmatprep.subr.mxu0 0.0
    %468 = vmatpush1.msra.mxu0 0.0
    %469 = vmatprep.subr.mxu0 0.0
    %470 = vmatpush1.msra.mxu0 0.0
    %471 = vmatprep.subr.mxu0 0.0
    %472 = vmatpush1.msra.mxu0 0.0
    %473 = vmatprep.subr.mxu0 0.0
    %474 = vmatpush1.msra.mxu0 %v438
    %475 = vmatprep.subr.mxu0 0.0
    %476 = vmatpush2.msra.mxu0 0.0
    %477 = vmatprep.subr.mxu0 0.0
    %478 = vmatpush2.msra.mxu0 0.0
    %479 = vmatprep.subr.mxu0 0.0
    %480 = vmatpush2.msra.mxu0 0.0
    %481 = vmatprep.subr.mxu0 0.0
    %482 = vmatpush2.msra.mxu0 0.0
    %483 = vmatprep.subr.mxu0 0.0
    %484 = vmatpush2.msra.mxu0 0.0
    %485 = vmatprep.subr.mxu0 0.0
    %486 = vmatpush2.msra.mxu0 0.0
    %487 = vmatprep.subr.mxu0 0.0
    %488 = vmatpush2.msra.mxu0 0.0
    %489 = vmatprep.subr.mxu0 0.0
    %490 = vmatpush2.msra.mxu0 0.0
    %491 = vmatprep.subr.mxu0 0.0
    %492 = vmatpush2.msra.mxu0 0.0
    %493 = vmatprep.subr.mxu0 0.0
    %494 = vmatpush2.msra.mxu0 0.0
    %495 = vmatprep.subr.mxu0 0.0
    %496 = vmatpush2.msra.mxu0 0.0
    %497 = vmatprep.subr.mxu0 0.0
    %498 = vmatpush2.msra.mxu0 0.0
    %499 = vmatprep.subr.mxu0 0.0
    %500 = vmatpush2.msra.mxu0 0.0
    %501 = vmatprep.subr.mxu0 0.0
    %502 = vmatpush2.msra.mxu0 0.0
    %503 = vmatprep.subr.mxu0 0.0
    %504 = vmatpush2.msra.mxu0 0.0
    %505 = vmatprep.subr.mxu0 0.0
    %506 = vmatpush2.msra.mxu0 0.0
    %507 = vmatprep.mubr.f32.mxu0 0.0
    %508 = vmatmul.mubr.f32.gmra.mxu0 %v441
    %v509 = vpop.f32.mrf.mxu0
    %v510 = vadd.f32 0.0, %v509
    %v511 = vpop.f32.mrf.mxu0
    %512 = vdwg.mxu0
    %513 = vrot.lane.b32.xlu0 %v166, 120
    %v514 = vpop.permute.xlu0 %513
    %515 = vrot.lane.b32.xlu0 %v166, 88
    %v516 = vpop.permute.xlu0 %515
    %v517 = vsel %vm183, %v514, 0
    %v519 = vsel %vm183, %v516, 0
    %521 = vmatprep.subr.mxu0 0.0
    %522 = vmatpush1.xpose.msra.mxu0 0.0
    %523 = vmatprep.subr.mxu0 0.0
    %524 = vmatpush1.xpose.msra.mxu0 0.0
    %525 = vmatprep.subr.mxu0 0.0
    %526 = vmatpush1.xpose.msra.mxu0 0.0
    %527 = vmatprep.subr.mxu0 0.0
    %528 = vmatpush1.xpose.msra.mxu0 0.0
    %529 = vmatprep.subr.mxu0 0.0
    %530 = vmatpush1.xpose.msra.mxu0 0.0
    %531 = vmatprep.subr.mxu0 0.0
    %532 = vmatpush1.xpose.msra.mxu0 0.0
    %533 = vmatprep.subr.mxu0 0.0
    %534 = vmatpush1.xpose.msra.mxu0 0.0
    %535 = vmatprep.subr.mxu0 0.0
    %536 = vmatpush1.xpose.msra.mxu0 0.0
    %537 = vmatprep.subr.mxu0 0.0
    %538 = vmatpush1.xpose.msra.mxu0 0.0
    %539 = vmatprep.subr.mxu0 0.0
    %540 = vmatpush1.xpose.msra.mxu0 0.0
    %541 = vmatprep.subr.mxu0 0.0
    %542 = vmatpush1.xpose.msra.mxu0 0.0
    %543 = vmatprep.subr.mxu0 0.0
    %544 = vmatpush1.xpose.msra.mxu0 0.0
    %545 = vmatprep.subr.mxu0 0.0
    %546 = vmatpush1.xpose.msra.mxu0 0.0
    %547 = vmatprep.subr.mxu0 0.0
    %548 = vmatpush1.xpose.msra.mxu0 0.0
    %549 = vmatprep.subr.mxu0 0.0
    %550 = vmatpush1.xpose.msra.mxu0 0.0
    %551 = vmatprep.subr.mxu0 0.0
    %552 = vmatpush1.xpose.msra.mxu0 %v519
    %553 = vmatprep.subr.mxu0 0.0
    %554 = vmatpush2.xpose.msra.mxu0 0.0
    %555 = vmatprep.subr.mxu0 0.0
    %556 = vmatpush2.xpose.msra.mxu0 0.0
    %557 = vmatprep.subr.mxu0 0.0
    %558 = vmatpush2.xpose.msra.mxu0 0.0
    %559 = vmatprep.subr.mxu0 0.0
    %560 = vmatpush2.xpose.msra.mxu0 0.0
    %561 = vmatprep.subr.mxu0 0.0
    %562 = vmatpush2.xpose.msra.mxu0 0.0
    %563 = vmatprep.subr.mxu0 0.0
    %564 = vmatpush2.xpose.msra.mxu0 0.0
    %565 = vmatprep.subr.mxu0 0.0
    %566 = vmatpush2.xpose.msra.mxu0 0.0
    %567 = vmatprep.subr.mxu0 0.0
    %568 = vmatpush2.xpose.msra.mxu0 0.0
    %569 = vmatprep.subr.mxu0 0.0
    %570 = vmatpush2.xpose.msra.mxu0 0.0
    %571 = vmatprep.subr.mxu0 0.0
    %572 = vmatpush2.xpose.msra.mxu0 0.0
    %573 = vmatprep.subr.mxu0 0.0
    %574 = vmatpush2.xpose.msra.mxu0 0.0
    %575 = vmatprep.subr.mxu0 0.0
    %576 = vmatpush2.xpose.msra.mxu0 0.0
    %577 = vmatprep.subr.mxu0 0.0
    %578 = vmatpush2.xpose.msra.mxu0 0.0
    %579 = vmatprep.subr.mxu0 0.0
    %580 = vmatpush2.xpose.msra.mxu0 0.0
    %581 = vmatprep.subr.mxu0 0.0
    %582 = vmatpush2.xpose.msra.mxu0 0.0
    %583 = vmatprep.subr.mxu0 0.0
    %584 = vmatpush2.xpose.msra.mxu0 0.0
    %585 = vmatprep.mubr.f32.mxu0 0.0
    %586 = vmatmul.mubr.f32.gmra.mxu0 %v517
    %v587 = vpop.f32.mrf.mxu0
    %v588 = vadd.f32 0.0, %v587
    %v589 = vpop.f32.mrf.mxu0
    %590 = vdwg.mxu0
    %591 = vrot.lane.b32.xlu0 %v171, 120
    %v592 = vpop.permute.xlu0 %591
    %593 = vrot.lane.b32.xlu0 %v171, 88
    %v594 = vpop.permute.xlu0 %593
    %v595 = vsel %vm183, %v592, 0
    %v597 = vsel %vm183, %v594, 0
    %599 = vmatprep.subr.mxu0 0.0
    %600 = vmatpush1.xpose.msra.mxu0 0.0
    %601 = vmatprep.subr.mxu0 0.0
    %602 = vmatpush1.xpose.msra.mxu0 0.0
    %603 = vmatprep.subr.mxu0 0.0
    %604 = vmatpush1.xpose.msra.mxu0 0.0
    %605 = vmatprep.subr.mxu0 0.0
    %606 = vmatpush1.xpose.msra.mxu0 0.0
    %607 = vmatprep.subr.mxu0 0.0
    %608 = vmatpush1.xpose.msra.mxu0 0.0
    %609 = vmatprep.subr.mxu0 0.0
    %610 = vmatpush1.xpose.msra.mxu0 0.0
    %611 = vmatprep.subr.mxu0 0.0
    %612 = vmatpush1.xpose.msra.mxu0 0.0
    %613 = vmatprep.subr.mxu0 0.0
    %614 = vmatpush1.xpose.msra.mxu0 0.0
    %615 = vmatprep.subr.mxu0 0.0
    %616 = vmatpush1.xpose.msra.mxu0 0.0
    %617 = vmatprep.subr.mxu0 0.0
    %618 = vmatpush1.xpose.msra.mxu0 0.0
    %619 = vmatprep.subr.mxu0 0.0
    %620 = vmatpush1.xpose.msra.mxu0 0.0
    %621 = vmatprep.subr.mxu0 0.0
    %622 = vmatpush1.xpose.msra.mxu0 0.0
    %623 = vmatprep.subr.mxu0 0.0
    %624 = vmatpush1.xpose.msra.mxu0 0.0
    %625 = vmatprep.subr.mxu0 0.0
    %626 = vmatpush1.xpose.msra.mxu0 0.0
    %627 = vmatprep.subr.mxu0 0.0
    %628 = vmatpush1.xpose.msra.mxu0 0.0
    %629 = vmatprep.subr.mxu0 0.0
    %630 = vmatpush1.xpose.msra.mxu0 %v597
    %631 = vmatprep.subr.mxu0 0.0
    %632 = vmatpush2.xpose.msra.mxu0 0.0
    %633 = vmatprep.subr.mxu0 0.0
    %634 = vmatpush2.xpose.msra.mxu0 0.0
    %635 = vmatprep.subr.mxu0 0.0
    %636 = vmatpush2.xpose.msra.mxu0 0.0
    %637 = vmatprep.subr.mxu0 0.0
    %638 = vmatpush2.xpose.msra.mxu0 0.0
    %639 = vmatprep.subr.mxu0 0.0
    %640 = vmatpush2.xpose.msra.mxu0 0.0
    %641 = vmatprep.subr.mxu0 0.0
    %642 = vmatpush2.xpose.msra.mxu0 0.0
    %643 = vmatprep.subr.mxu0 0.0
    %644 = vmatpush2.xpose.msra.mxu0 0.0
    %645 = vmatprep.subr.mxu0 0.0
    %646 = vmatpush2.xpose.msra.mxu0 0.0
    %647 = vmatprep.subr.mxu0 0.0
    %648 = vmatpush2.xpose.msra.mxu0 0.0
    %649 = vmatprep.subr.mxu0 0.0
    %650 = vmatpush2.xpose.msra.mxu0 0.0
    %651 = vmatprep.subr.mxu0 0.0
    %652 = vmatpush2.xpose.msra.mxu0 0.0
    %653 = vmatprep.subr.mxu0 0.0
    %654 = vmatpush2.xpose.msra.mxu0 0.0
    %655 = vmatprep.subr.mxu0 0.0
    %656 = vmatpush2.xpose.msra.mxu0 0.0
    %657 = vmatprep.subr.mxu0 0.0
    %658 = vmatpush2.xpose.msra.mxu0 0.0
    %659 = vmatprep.subr.mxu0 0.0
    %660 = vmatpush2.xpose.msra.mxu0 0.0
    %661 = vmatprep.subr.mxu0 0.0
    %662 = vmatpush2.xpose.msra.mxu0 0.0
    %663 = vmatprep.mubr.f32.mxu0 0.0
    %664 = vmatmul.mubr.f32.gmra.mxu0 %v595
    %v665 = vpop.f32.mrf.mxu0
    %v666 = vadd.f32 0.0, %v665
    %v667 = vpop.f32.mrf.mxu0
    %668 = vdwg.mxu0
    %v669 = vmul.f32 %v588, 0.35355338
    %v670 = vmul.f32 %v666, 0.35355338
    %v671 = vadd.f32 %v669, %v179
    %v672 = vadd.f32 %v670, %v179
    %v673 = vsel %vm183, %v671, -inf
    %674 = vmax.xlane.f32.xlu0 %v673
    %v675 = vpop.xlane.xlu0 %674
    %v676 = vsel %vm183, %v672, -inf
    %677 = vmax.xlane.f32.xlu0 %v676
    %v678 = vpop.xlane.xlu0 %677
    %v679 = vsub.f32 %v671, %v675
    %v680 = vsub.f32 %v672, %v678
    %v681 = vmul.f32 %v679, 1.442695
    %v682 = vpow.pop %v681
    %v683 = vmul.f32 %v680, 1.442695
    %v684 = vpow.pop %v683
    %v685 = vsel %vm183, %v682, 0.0
    %686 = vadd.xlane.f32.xlu0 %v685
    %v687 = vpop.xlane.xlu0 %686
    %v688 = vsel %vm183, %v684, 0.0
    %689 = vadd.xlane.f32.xlu0 %v688
    %v690 = vpop.xlane.xlu0 %689
    %v691 = vrcp.pop %v687
    %v692 = vrcp.pop %v690
    %v693 = vmul.f32 %v682, %v691
    %v694 = vmul.f32 %v684, %v692
    %695 = vrot.lane.b32.xlu0 %v166, 56
    %v696 = vpop.permute.xlu0 %695
    %v699 = vsel %vm183, %v693, 0
    %701 = vmatprep.subr.mxu0 0.0
    %702 = vmatpush1.msra.mxu0 0.0
    %703 = vmatprep.subr.mxu0 0.0
    %704 = vmatpush1.msra.mxu0 0.0
    %705 = vmatprep.subr.mxu0 0.0
    %706 = vmatpush1.msra.mxu0 0.0
    %707 = vmatprep.subr.mxu0 0.0
    %708 = vmatpush1.msra.mxu0 0.0
    %709 = vmatprep.subr.mxu0 0.0
    %710 = vmatpush1.msra.mxu0 0.0
    %711 = vmatprep.subr.mxu0 0.0
    %712 = vmatpush1.msra.mxu0 0.0
    %713 = vmatprep.subr.mxu0 0.0
    %714 = vmatpush1.msra.mxu0 0.0
    %715 = vmatprep.subr.mxu0 0.0
    %716 = vmatpush1.msra.mxu0 0.0
    %717 = vmatprep.subr.mxu0 0.0
    %718 = vmatpush1.msra.mxu0 0.0
    %719 = vmatprep.subr.mxu0 0.0
    %720 = vmatpush1.msra.mxu0 0.0
    %721 = vmatprep.subr.mxu0 0.0
    %722 = vmatpush1.msra.mxu0 0.0
    %723 = vmatprep.subr.mxu0 0.0
    %724 = vmatpush1.msra.mxu0 0.0
    %725 = vmatprep.subr.mxu0 0.0
    %726 = vmatpush1.msra.mxu0 0.0
    %727 = vmatprep.subr.mxu0 0.0
    %728 = vmatpush1.msra.mxu0 0.0
    %729 = vmatprep.subr.mxu0 0.0
    %730 = vmatpush1.msra.mxu0 0.0
    %731 = vmatprep.subr.mxu0 0.0
    %732 = vmatpush1.msra.mxu0 %v696
    %733 = vmatprep.subr.mxu0 0.0
    %734 = vmatpush2.msra.mxu0 0.0
    %735 = vmatprep.subr.mxu0 0.0
    %736 = vmatpush2.msra.mxu0 0.0
    %737 = vmatprep.subr.mxu0 0.0
    %738 = vmatpush2.msra.mxu0 0.0
    %739 = vmatprep.subr.mxu0 0.0
    %740 = vmatpush2.msra.mxu0 0.0
    %741 = vmatprep.subr.mxu0 0.0
    %742 = vmatpush2.msra.mxu0 0.0
    %743 = vmatprep.subr.mxu0 0.0
    %744 = vmatpush2.msra.mxu0 0.0
    %745 = vmatprep.subr.mxu0 0.0
    %746 = vmatpush2.msra.mxu0 0.0
    %747 = vmatprep.subr.mxu0 0.0
    %748 = vmatpush2.msra.mxu0 0.0
    %749 = vmatprep.subr.mxu0 0.0
    %750 = vmatpush2.msra.mxu0 0.0
    %751 = vmatprep.subr.mxu0 0.0
    %752 = vmatpush2.msra.mxu0 0.0
    %753 = vmatprep.subr.mxu0 0.0
    %754 = vmatpush2.msra.mxu0 0.0
    %755 = vmatprep.subr.mxu0 0.0
    %756 = vmatpush2.msra.mxu0 0.0
    %757 = vmatprep.subr.mxu0 0.0
    %758 = vmatpush2.msra.mxu0 0.0
    %759 = vmatprep.subr.mxu0 0.0
    %760 = vmatpush2.msra.mxu0 0.0
    %761 = vmatprep.subr.mxu0 0.0
    %762 = vmatpush2.msra.mxu0 0.0
    %763 = vmatprep.subr.mxu0 0.0
    %764 = vmatpush2.msra.mxu0 0.0
    %765 = vmatprep.mubr.f32.mxu0 0.0
    %766 = vmatmul.mubr.f32.gmra.mxu0 %v699
    %v767 = vpop.f32.mrf.mxu0
    %v768 = vadd.f32 0.0, %v767
    %v769 = vpop.f32.mrf.mxu0
    %770 = vdwg.mxu0
    %771 = vrot.lane.b32.xlu0 %v171, 56
    %v772 = vpop.permute.xlu0 %771
    %v775 = vsel %vm183, %v694, 0
    %777 = vmatprep.subr.mxu0 0.0
    %778 = vmatpush1.msra.mxu0 0.0
    %779 = vmatprep.subr.mxu0 0.0
    %780 = vmatpush1.msra.mxu0 0.0
    %781 = vmatprep.subr.mxu0 0.0
    %782 = vmatpush1.msra.mxu0 0.0
    %783 = vmatprep.subr.mxu0 0.0
    %784 = vmatpush1.msra.mxu0 0.0
    %785 = vmatprep.subr.mxu0 0.0
    %786 = vmatpush1.msra.mxu0 0.0
    %787 = vmatprep.subr.mxu0 0.0
    %788 = vmatpush1.msra.mxu0 0.0
    %789 = vmatprep.subr.mxu0 0.0
    %790 = vmatpush1.msra.mxu0 0.0
    %791 = vmatprep.subr.mxu0 0.0
    %792 = vmatpush1.msra.mxu0 0.0
    %793 = vmatprep.subr.mxu0 0.0
    %794 = vmatpush1.msra.mxu0 0.0
    %795 = vmatprep.subr.mxu0 0.0
    %796 = vmatpush1.msra.mxu0 0.0
    %797 = vmatprep.subr.mxu0 0.0
    %798 = vmatpush1.msra.mxu0 0.0
    %799 = vmatprep.subr.mxu0 0.0
    %800 = vmatpush1.msra.mxu0 0.0
    %801 = vmatprep.subr.mxu0 0.0
    %802 = vmatpush1.msra.mxu0 0.0
    %803 = vmatprep.subr.mxu0 0.0
    %804 = vmatpush1.msra.mxu0 0.0
    %805 = vmatprep.subr.mxu0 0.0
    %806 = vmatpush1.msra.mxu0 0.0
    %807 = vmatprep.subr.mxu0 0.0
    %808 = vmatpush1.msra.mxu0 %v772
    %809 = vmatprep.subr.mxu0 0.0
    %810 = vmatpush2.msra.mxu0 0.0
    %811 = vmatprep.subr.mxu0 0.0
    %812 = vmatpush2.msra.mxu0 0.0
    %813 = vmatprep.subr.mxu0 0.0
    %814 = vmatpush2.msra.mxu0 0.0
    %815 = vmatprep.subr.mxu0 0.0
    %816 = vmatpush2.msra.mxu0 0.0
    %817 = vmatprep.subr.mxu0 0.0
    %818 = vmatpush2.msra.mxu0 0.0
    %819 = vmatprep.subr.mxu0 0.0
    %820 = vmatpush2.msra.mxu0 0.0
    %821 = vmatprep.subr.mxu0 0.0
    %822 = vmatpush2.msra.mxu0 0.0
    %823 = vmatprep.subr.mxu0 0.0
    %824 = vmatpush2.msra.mxu0 0.0
    %825 = vmatprep.subr.mxu0 0.0
    %826 = vmatpush2.msra.mxu0 0.0
    %827 = vmatprep.subr.mxu0 0.0
    %828 = vmatpush2.msra.mxu0 0.0
    %829 = vmatprep.subr.mxu0 0.0
    %830 = vmatpush2.msra.mxu0 0.0
    %831 = vmatprep.subr.mxu0 0.0
    %832 = vmatpush2.msra.mxu0 0.0
    %833 = vmatprep.subr.mxu0 0.0
    %834 = vmatpush2.msra.mxu0 0.0
    %835 = vmatprep.subr.mxu0 0.0
    %836 = vmatpush2.msra.mxu0 0.0
    %837 = vmatprep.subr.mxu0 0.0
    %838 = vmatpush2.msra.mxu0 0.0
    %839 = vmatprep.subr.mxu0 0.0
    %840 = vmatpush2.msra.mxu0 0.0
    %841 = vmatprep.mubr.f32.mxu0 0.0
    %842 = vmatmul.mubr.f32.gmra.mxu0 %v775
    %v843 = vpop.f32.mrf.mxu0
    %v844 = vadd.f32 0.0, %v843
    %v845 = vpop.f32.mrf.mxu0
    %846 = vdwg.mxu0
    %847 = vrot.lane.b32.xlu0 %v166, 112
    %v848 = vpop.permute.xlu0 %847
    %849 = vrot.lane.b32.xlu0 %v166, 80
    %v850 = vpop.permute.xlu0 %849
    %v851 = vsel %vm183, %v848, 0
    %v853 = vsel %vm183, %v850, 0
    %855 = vmatprep.subr.mxu0 0.0
    %856 = vmatpush1.xpose.msra.mxu0 0.0
    %857 = vmatprep.subr.mxu0 0.0
    %858 = vmatpush1.xpose.msra.mxu0 0.0
    %859 = vmatprep.subr.mxu0 0.0
    %860 = vmatpush1.xpose.msra.mxu0 0.0
    %861 = vmatprep.subr.mxu0 0.0
    %862 = vmatpush1.xpose.msra.mxu0 0.0
    %863 = vmatprep.subr.mxu0 0.0
    %864 = vmatpush1.xpose.msra.mxu0 0.0
    %865 = vmatprep.subr.mxu0 0.0
    %866 = vmatpush1.xpose.msra.mxu0 0.0
    %867 = vmatprep.subr.mxu0 0.0
    %868 = vmatpush1.xpose.msra.mxu0 0.0
    %869 = vmatprep.subr.mxu0 0.0
    %870 = vmatpush1.xpose.msra.mxu0 0.0
    %871 = vmatprep.subr.mxu0 0.0
    %872 = vmatpush1.xpose.msra.mxu0 0.0
    %873 = vmatprep.subr.mxu0 0.0
    %874 = vmatpush1.xpose.msra.mxu0 0.0
    %875 = vmatprep.subr.mxu0 0.0
    %876 = vmatpush1.xpose.msra.mxu0 0.0
    %877 = vmatprep.subr.mxu0 0.0
    %878 = vmatpush1.xpose.msra.mxu0 0.0
    %879 = vmatprep.subr.mxu0 0.0
    %880 = vmatpush1.xpose.msra.mxu0 0.0
    %881 = vmatprep.subr.mxu0 0.0
    %882 = vmatpush1.xpose.msra.mxu0 0.0
    %883 = vmatprep.subr.mxu0 0.0
    %884 = vmatpush1.xpose.msra.mxu0 0.0
    %885 = vmatprep.subr.mxu0 0.0
    %886 = vmatpush1.xpose.msra.mxu0 %v853
    %887 = vmatprep.subr.mxu0 0.0
    %888 = vmatpush2.xpose.msra.mxu0 0.0
    %889 = vmatprep.subr.mxu0 0.0
    %890 = vmatpush2.xpose.msra.mxu0 0.0
    %891 = vmatprep.subr.mxu0 0.0
    %892 = vmatpush2.xpose.msra.mxu0 0.0
    %893 = vmatprep.subr.mxu0 0.0
    %894 = vmatpush2.xpose.msra.mxu0 0.0
    %895 = vmatprep.subr.mxu0 0.0
    %896 = vmatpush2.xpose.msra.mxu0 0.0
    %897 = vmatprep.subr.mxu0 0.0
    %898 = vmatpush2.xpose.msra.mxu0 0.0
    %899 = vmatprep.subr.mxu0 0.0
    %900 = vmatpush2.xpose.msra.mxu0 0.0
    %901 = vmatprep.subr.mxu0 0.0
    %902 = vmatpush2.xpose.msra.mxu0 0.0
    %903 = vmatprep.subr.mxu0 0.0
    %904 = vmatpush2.xpose.msra.mxu0 0.0
    %905 = vmatprep.subr.mxu0 0.0
    %906 = vmatpush2.xpose.msra.mxu0 0.0
    %907 = vmatprep.subr.mxu0 0.0
    %908 = vmatpush2.xpose.msra.mxu0 0.0
    %909 = vmatprep.subr.mxu0 0.0
    %910 = vmatpush2.xpose.msra.mxu0 0.0
    %911 = vmatprep.subr.mxu0 0.0
    %912 = vmatpush2.xpose.msra.mxu0 0.0
    %913 = vmatprep.subr.mxu0 0.0
    %914 = vmatpush2.xpose.msra.mxu0 0.0
    %915 = vmatprep.subr.mxu0 0.0
    %916 = vmatpush2.xpose.msra.mxu0 0.0
    %917 = vmatprep.subr.mxu0 0.0
    %918 = vmatpush2.xpose.msra.mxu0 0.0
    %919 = vmatprep.mubr.f32.mxu0 0.0
    %920 = vmatmul.mubr.f32.gmra.mxu0 %v851
    %v921 = vpop.f32.mrf.mxu0
    %v922 = vadd.f32 0.0, %v921
    %v923 = vpop.f32.mrf.mxu0
    %924 = vdwg.mxu0
    %925 = vrot.lane.b32.xlu0 %v171, 112
    %v926 = vpop.permute.xlu0 %925
    %927 = vrot.lane.b32.xlu0 %v171, 80
    %v928 = vpop.permute.xlu0 %927
    %v929 = vsel %vm183, %v926, 0
    %v931 = vsel %vm183, %v928, 0
    %933 = vmatprep.subr.mxu0 0.0
    %934 = vmatpush1.xpose.msra.mxu0 0.0
    %935 = vmatprep.subr.mxu0 0.0
    %936 = vmatpush1.xpose.msra.mxu0 0.0
    %937 = vmatprep.subr.mxu0 0.0
    %938 = vmatpush1.xpose.msra.mxu0 0.0
    %939 = vmatprep.subr.mxu0 0.0
    %940 = vmatpush1.xpose.msra.mxu0 0.0
    %941 = vmatprep.subr.mxu0 0.0
    %942 = vmatpush1.xpose.msra.mxu0 0.0
    %943 = vmatprep.subr.mxu0 0.0
    %944 = vmatpush1.xpose.msra.mxu0 0.0
    %945 = vmatprep.subr.mxu0 0.0
    %946 = vmatpush1.xpose.msra.mxu0 0.0
    %947 = vmatprep.subr.mxu0 0.0
    %948 = vmatpush1.xpose.msra.mxu0 0.0
    %949 = vmatprep.subr.mxu0 0.0
    %950 = vmatpush1.xpose.msra.mxu0 0.0
    %951 = vmatprep.subr.mxu0 0.0
    %952 = vmatpush1.xpose.msra.mxu0 0.0
    %953 = vmatprep.subr.mxu0 0.0
    %954 = vmatpush1.xpose.msra.mxu0 0.0
    %955 = vmatprep.subr.mxu0 0.0
    %956 = vmatpush1.xpose.msra.mxu0 0.0
    %957 = vmatprep.subr.mxu0 0.0
    %958 = vmatpush1.xpose.msra.mxu0 0.0
    %959 = vmatprep.subr.mxu0 0.0
    %960 = vmatpush1.xpose.msra.mxu0 0.0
    %961 = vmatprep.subr.mxu0 0.0
    %962 = vmatpush1.xpose.msra.mxu0 0.0
    %963 = vmatprep.subr.mxu0 0.0
    %964 = vmatpush1.xpose.msra.mxu0 %v931
    %965 = vmatprep.subr.mxu0 0.0
    %966 = vmatpush2.xpose.msra.mxu0 0.0
    %967 = vmatprep.subr.mxu0 0.0
    %968 = vmatpush2.xpose.msra.mxu0 0.0
    %969 = vmatprep.subr.mxu0 0.0
    %970 = vmatpush2.xpose.msra.mxu0 0.0
    %971 = vmatprep.subr.mxu0 0.0
    %972 = vmatpush2.xpose.msra.mxu0 0.0
    %973 = vmatprep.subr.mxu0 0.0
    %974 = vmatpush2.xpose.msra.mxu0 0.0
    %975 = vmatprep.subr.mxu0 0.0
    %976 = vmatpush2.xpose.msra.mxu0 0.0
    %977 = vmatprep.subr.mxu0 0.0
    %978 = vmatpush2.xpose.msra.mxu0 0.0
    %979 = vmatprep.subr.mxu0 0.0
    %980 = vmatpush2.xpose.msra.mxu0 0.0
    %981 = vmatprep.subr.mxu0 0.0
    %982 = vmatpush2.xpose.msra.mxu0 0.0
    %983 = vmatprep.subr.mxu0 0.0
    %984 = vmatpush2.xpose.msra.mxu0 0.0
    %985 = vmatprep.subr.mxu0 0.0
    %986 = vmatpush2.xpose.msra.mxu0 0.0
    %987 = vmatprep.subr.mxu0 0.0
    %988 = vmatpush2.xpose.msra.mxu0 0.0
    %989 = vmatprep.subr.mxu0 0.0
    %990 = vmatpush2.xpose.msra.mxu0 0.0
    %991 = vmatprep.subr.mxu0 0.0
    %992 = vmatpush2.xpose.msra.mxu0 0.0
    %993 = vmatprep.subr.mxu0 0.0
    %994 = vmatpush2.xpose.msra.mxu0 0.0
    %995 = vmatprep.subr.mxu0 0.0
    %996 = vmatpush2.xpose.msra.mxu0 0.0
    %997 = vmatprep.mubr.f32.mxu0 0.0
    %998 = vmatmul.mubr.f32.gmra.mxu0 %v929
    %v999 = vpop.f32.mrf.mxu0
    %v1000 = vadd.f32 0.0, %v999
    %v1001 = vpop.f32.mrf.mxu0
    %1002 = vdwg.mxu0
    %v1003 = vmul.f32 %v922, 0.35355338
    %v1004 = vmul.f32 %v1000, 0.35355338
    %v1005 = vadd.f32 %v1003, %v179
    %v1006 = vadd.f32 %v1004, %v179
    %v1007 = vsel %vm183, %v1005, -inf
    %1008 = vmax.xlane.f32.xlu0 %v1007
    %v1009 = vpop.xlane.xlu0 %1008
    %v1010 = vsel %vm183, %v1006, -inf
    %1011 = vmax.xlane.f32.xlu0 %v1010
    %v1012 = vpop.xlane.xlu0 %1011
    %v1013 = vsub.f32 %v1005, %v1009
    %v1014 = vsub.f32 %v1006, %v1012
    %v1015 = vmul.f32 %v1013, 1.442695
    %v1016 = vpow.pop %v1015
    %v1017 = vmul.f32 %v1014, 1.442695
    %v1018 = vpow.pop %v1017
    %v1019 = vsel %vm183, %v1016, 0.0
    %1020 = vadd.xlane.f32.xlu0 %v1019
    %v1021 = vpop.xlane.xlu0 %1020
    %v1022 = vsel %vm183, %v1018, 0.0
    %1023 = vadd.xlane.f32.xlu0 %v1022
    %v1024 = vpop.xlane.xlu0 %1023
    %v1025 = vrcp.pop %v1021
    %v1026 = vrcp.pop %v1024
    %v1027 = vmul.f32 %v1016, %v1025
    %v1028 = vmul.f32 %v1018, %v1026
    %1029 = vrot.lane.b32.xlu0 %v166, 48
    %v1030 = vpop.permute.xlu0 %1029
    %v1033 = vsel %vm183, %v1027, 0
    %1035 = vmatprep.subr.mxu0 0.0
    %1036 = vmatpush1.msra.mxu0 0.0
    %1037 = vmatprep.subr.mxu0 0.0
    %1038 = vmatpush1.msra.mxu0 0.0
    %1039 = vmatprep.subr.mxu0 0.0
    %1040 = vmatpush1.msra.mxu0 0.0
    %1041 = vmatprep.subr.mxu0 0.0
    %1042 = vmatpush1.msra.mxu0 0.0
    %1043 = vmatprep.subr.mxu0 0.0
    %1044 = vmatpush1.msra.mxu0 0.0
    %1045 = vmatprep.subr.mxu0 0.0
    %1046 = vmatpush1.msra.mxu0 0.0
    %1047 = vmatprep.subr.mxu0 0.0
    %1048 = vmatpush1.msra.mxu0 0.0
    %1049 = vmatprep.subr.mxu0 0.0
    %1050 = vmatpush1.msra.mxu0 0.0
    %1051 = vmatprep.subr.mxu0 0.0
    %1052 = vmatpush1.msra.mxu0 0.0
    %1053 = vmatprep.subr.mxu0 0.0
    %1054 = vmatpush1.msra.mxu0 0.0
    %1055 = vmatprep.subr.mxu0 0.0
    %1056 = vmatpush1.msra.mxu0 0.0
    %1057 = vmatprep.subr.mxu0 0.0
    %1058 = vmatpush1.msra.mxu0 0.0
    %1059 = vmatprep.subr.mxu0 0.0
    %1060 = vmatpush1.msra.mxu0 0.0
    %1061 = vmatprep.subr.mxu0 0.0
    %1062 = vmatpush1.msra.mxu0 0.0
    %1063 = vmatprep.subr.mxu0 0.0
    %1064 = vmatpush1.msra.mxu0 0.0
    %1065 = vmatprep.subr.mxu0 0.0
    %1066 = vmatpush1.msra.mxu0 %v1030
    %1067 = vmatprep.subr.mxu0 0.0
    %1068 = vmatpush2.msra.mxu0 0.0
    %1069 = vmatprep.subr.mxu0 0.0
    %1070 = vmatpush2.msra.mxu0 0.0
    %1071 = vmatprep.subr.mxu0 0.0
    %1072 = vmatpush2.msra.mxu0 0.0
    %1073 = vmatprep.subr.mxu0 0.0
    %1074 = vmatpush2.msra.mxu0 0.0
    %1075 = vmatprep.subr.mxu0 0.0
    %1076 = vmatpush2.msra.mxu0 0.0
    %1077 = vmatprep.subr.mxu0 0.0
    %1078 = vmatpush2.msra.mxu0 0.0
    %1079 = vmatprep.subr.mxu0 0.0
    %1080 = vmatpush2.msra.mxu0 0.0
    %1081 = vmatprep.subr.mxu0 0.0
    %1082 = vmatpush2.msra.mxu0 0.0
    %1083 = vmatprep.subr.mxu0 0.0
    %1084 = vmatpush2.msra.mxu0 0.0
    %1085 = vmatprep.subr.mxu0 0.0
    %1086 = vmatpush2.msra.mxu0 0.0
    %1087 = vmatprep.subr.mxu0 0.0
    %1088 = vmatpush2.msra.mxu0 0.0
    %1089 = vmatprep.subr.mxu0 0.0
    %1090 = vmatpush2.msra.mxu0 0.0
    %1091 = vmatprep.subr.mxu0 0.0
    %1092 = vmatpush2.msra.mxu0 0.0
    %1093 = vmatprep.subr.mxu0 0.0
    %1094 = vmatpush2.msra.mxu0 0.0
    %1095 = vmatprep.subr.mxu0 0.0
    %1096 = vmatpush2.msra.mxu0 0.0
    %1097 = vmatprep.subr.mxu0 0.0
    %1098 = vmatpush2.msra.mxu0 0.0
    %1099 = vmatprep.mubr.f32.mxu0 0.0
    %1100 = vmatmul.mubr.f32.gmra.mxu0 %v1033
    %v1101 = vpop.f32.mrf.mxu0
    %v1102 = vadd.f32 0.0, %v1101
    %v1103 = vpop.f32.mrf.mxu0
    %1104 = vdwg.mxu0
    %1105 = vrot.lane.b32.xlu0 %v171, 48
    %v1106 = vpop.permute.xlu0 %1105
    %v1109 = vsel %vm183, %v1028, 0
    %1111 = vmatprep.subr.mxu0 0.0
    %1112 = vmatpush1.msra.mxu0 0.0
    %1113 = vmatprep.subr.mxu0 0.0
    %1114 = vmatpush1.msra.mxu0 0.0
    %1115 = vmatprep.subr.mxu0 0.0
    %1116 = vmatpush1.msra.mxu0 0.0
    %1117 = vmatprep.subr.mxu0 0.0
    %1118 = vmatpush1.msra.mxu0 0.0
    %1119 = vmatprep.subr.mxu0 0.0
    %1120 = vmatpush1.msra.mxu0 0.0
    %1121 = vmatprep.subr.mxu0 0.0
    %1122 = vmatpush1.msra.mxu0 0.0
    %1123 = vmatprep.subr.mxu0 0.0
    %1124 = vmatpush1.msra.mxu0 0.0
    %1125 = vmatprep.subr.mxu0 0.0
    %1126 = vmatpush1.msra.mxu0 0.0
    %1127 = vmatprep.subr.mxu0 0.0
    %1128 = vmatpush1.msra.mxu0 0.0
    %1129 = vmatprep.subr.mxu0 0.0
    %1130 = vmatpush1.msra.mxu0 0.0
    %1131 = vmatprep.subr.mxu0 0.0
    %1132 = vmatpush1.msra.mxu0 0.0
    %1133 = vmatprep.subr.mxu0 0.0
    %1134 = vmatpush1.msra.mxu0 0.0
    %1135 = vmatprep.subr.mxu0 0.0
    %1136 = vmatpush1.msra.mxu0 0.0
    %1137 = vmatprep.subr.mxu0 0.0
    %1138 = vmatpush1.msra.mxu0 0.0
    %1139 = vmatprep.subr.mxu0 0.0
    %1140 = vmatpush1.msra.mxu0 0.0
    %1141 = vmatprep.subr.mxu0 0.0
    %1142 = vmatpush1.msra.mxu0 %v1106
    %1143 = vmatprep.subr.mxu0 0.0
    %1144 = vmatpush2.msra.mxu0 0.0
    %1145 = vmatprep.subr.mxu0 0.0
    %1146 = vmatpush2.msra.mxu0 0.0
    %1147 = vmatprep.subr.mxu0 0.0
    %1148 = vmatpush2.msra.mxu0 0.0
    %1149 = vmatprep.subr.mxu0 0.0
    %1150 = vmatpush2.msra.mxu0 0.0
    %1151 = vmatprep.subr.mxu0 0.0
    %1152 = vmatpush2.msra.mxu0 0.0
    %1153 = vmatprep.subr.mxu0 0.0
    %1154 = vmatpush2.msra.mxu0 0.0
    %1155 = vmatprep.subr.mxu0 0.0
    %1156 = vmatpush2.msra.mxu0 0.0
    %1157 = vmatprep.subr.mxu0 0.0
    %1158 = vmatpush2.msra.mxu0 0.0
    %1159 = vmatprep.subr.mxu0 0.0
    %1160 = vmatpush2.msra.mxu0 0.0
    %1161 = vmatprep.subr.mxu0 0.0
    %1162 = vmatpush2.msra.mxu0 0.0
    %1163 = vmatprep.subr.mxu0 0.0
    %1164 = vmatpush2.msra.mxu0 0.0
    %1165 = vmatprep.subr.mxu0 0.0
    %1166 = vmatpush2.msra.mxu0 0.0
    %1167 = vmatprep.subr.mxu0 0.0
    %1168 = vmatpush2.msra.mxu0 0.0
    %1169 = vmatprep.subr.mxu0 0.0
    %1170 = vmatpush2.msra.mxu0 0.0
    %1171 = vmatprep.subr.mxu0 0.0
    %1172 = vmatpush2.msra.mxu0 0.0
    %1173 = vmatprep.subr.mxu0 0.0
    %1174 = vmatpush2.msra.mxu0 0.0
    %1175 = vmatprep.mubr.f32.mxu0 0.0
    %1176 = vmatmul.mubr.f32.gmra.mxu0 %v1109
    %v1177 = vpop.f32.mrf.mxu0
    %v1178 = vadd.f32 0.0, %v1177
    %v1179 = vpop.f32.mrf.mxu0
    %1180 = vdwg.mxu0
    %1181 = vrot.lane.b32.xlu0 %v166, 104
    %v1182 = vpop.permute.xlu0 %1181
    %1183 = vrot.lane.b32.xlu0 %v166, 72
    %v1184 = vpop.permute.xlu0 %1183
    %v1185 = vsel %vm183, %v1182, 0
    %v1187 = vsel %vm183, %v1184, 0
    %1189 = vmatprep.subr.mxu0 0.0
    %1190 = vmatpush1.xpose.msra.mxu0 0.0
    %1191 = vmatprep.subr.mxu0 0.0
    %1192 = vmatpush1.xpose.msra.mxu0 0.0
    %1193 = vmatprep.subr.mxu0 0.0
    %1194 = vmatpush1.xpose.msra.mxu0 0.0
    %1195 = vmatprep.subr.mxu0 0.0
    %1196 = vmatpush1.xpose.msra.mxu0 0.0
    %1197 = vmatprep.subr.mxu0 0.0
    %1198 = vmatpush1.xpose.msra.mxu0 0.0
    %1199 = vmatprep.subr.mxu0 0.0
    %1200 = vmatpush1.xpose.msra.mxu0 0.0
    %1201 = vmatprep.subr.mxu0 0.0
    %1202 = vmatpush1.xpose.msra.mxu0 0.0
    %1203 = vmatprep.subr.mxu0 0.0
    %1204 = vmatpush1.xpose.msra.mxu0 0.0
    %1205 = vmatprep.subr.mxu0 0.0
    %1206 = vmatpush1.xpose.msra.mxu0 0.0
    %1207 = vmatprep.subr.mxu0 0.0
    %1208 = vmatpush1.xpose.msra.mxu0 0.0
    %1209 = vmatprep.subr.mxu0 0.0
    %1210 = vmatpush1.xpose.msra.mxu0 0.0
    %1211 = vmatprep.subr.mxu0 0.0
    %1212 = vmatpush1.xpose.msra.mxu0 0.0
    %1213 = vmatprep.subr.mxu0 0.0
    %1214 = vmatpush1.xpose.msra.mxu0 0.0
    %1215 = vmatprep.subr.mxu0 0.0
    %1216 = vmatpush1.xpose.msra.mxu0 0.0
    %1217 = vmatprep.subr.mxu0 0.0
    %1218 = vmatpush1.xpose.msra.mxu0 0.0
    %1219 = vmatprep.subr.mxu0 0.0
    %1220 = vmatpush1.xpose.msra.mxu0 %v1187
    %1221 = vmatprep.subr.mxu0 0.0
    %1222 = vmatpush2.xpose.msra.mxu0 0.0
    %1223 = vmatprep.subr.mxu0 0.0
    %1224 = vmatpush2.xpose.msra.mxu0 0.0
    %1225 = vmatprep.subr.mxu0 0.0
    %1226 = vmatpush2.xpose.msra.mxu0 0.0
    %1227 = vmatprep.subr.mxu0 0.0
    %1228 = vmatpush2.xpose.msra.mxu0 0.0
    %1229 = vmatprep.subr.mxu0 0.0
    %1230 = vmatpush2.xpose.msra.mxu0 0.0
    %1231 = vmatprep.subr.mxu0 0.0
    %1232 = vmatpush2.xpose.msra.mxu0 0.0
    %1233 = vmatprep.subr.mxu0 0.0
    %1234 = vmatpush2.xpose.msra.mxu0 0.0
    %1235 = vmatprep.subr.mxu0 0.0
    %1236 = vmatpush2.xpose.msra.mxu0 0.0
    %1237 = vmatprep.subr.mxu0 0.0
    %1238 = vmatpush2.xpose.msra.mxu0 0.0
    %1239 = vmatprep.subr.mxu0 0.0
    %1240 = vmatpush2.xpose.msra.mxu0 0.0
    %1241 = vmatprep.subr.mxu0 0.0
    %1242 = vmatpush2.xpose.msra.mxu0 0.0
    %1243 = vmatprep.subr.mxu0 0.0
    %1244 = vmatpush2.xpose.msra.mxu0 0.0
    %1245 = vmatprep.subr.mxu0 0.0
    %1246 = vmatpush2.xpose.msra.mxu0 0.0
    %1247 = vmatprep.subr.mxu0 0.0
    %1248 = vmatpush2.xpose.msra.mxu0 0.0
    %1249 = vmatprep.subr.mxu0 0.0
    %1250 = vmatpush2.xpose.msra.mxu0 0.0
    %1251 = vmatprep.subr.mxu0 0.0
    %1252 = vmatpush2.xpose.msra.mxu0 0.0
    %1253 = vmatprep.mubr.f32.mxu0 0.0
    %1254 = vmatmul.mubr.f32.gmra.mxu0 %v1185
    %v1255 = vpop.f32.mrf.mxu0
    %v1256 = vadd.f32 0.0, %v1255
    %v1257 = vpop.f32.mrf.mxu0
    %1258 = vdwg.mxu0
    %1259 = vrot.lane.b32.xlu0 %v171, 104
    %v1260 = vpop.permute.xlu0 %1259
    %1261 = vrot.lane.b32.xlu0 %v171, 72
    %v1262 = vpop.permute.xlu0 %1261
    %v1263 = vsel %vm183, %v1260, 0
    %v1265 = vsel %vm183, %v1262, 0
    %1267 = vmatprep.subr.mxu0 0.0
    %1268 = vmatpush1.xpose.msra.mxu0 0.0
    %1269 = vmatprep.subr.mxu0 0.0
    %1270 = vmatpush1.xpose.msra.mxu0 0.0
    %1271 = vmatprep.subr.mxu0 0.0
    %1272 = vmatpush1.xpose.msra.mxu0 0.0
    %1273 = vmatprep.subr.mxu0 0.0
    %1274 = vmatpush1.xpose.msra.mxu0 0.0
    %1275 = vmatprep.subr.mxu0 0.0
    %1276 = vmatpush1.xpose.msra.mxu0 0.0
    %1277 = vmatprep.subr.mxu0 0.0
    %1278 = vmatpush1.xpose.msra.mxu0 0.0
    %1279 = vmatprep.subr.mxu0 0.0
    %1280 = vmatpush1.xpose.msra.mxu0 0.0
    %1281 = vmatprep.subr.mxu0 0.0
    %1282 = vmatpush1.xpose.msra.mxu0 0.0
    %1283 = vmatprep.subr.mxu0 0.0
    %1284 = vmatpush1.xpose.msra.mxu0 0.0
    %1285 = vmatprep.subr.mxu0 0.0
    %1286 = vmatpush1.xpose.msra.mxu0 0.0
    %1287 = vmatprep.subr.mxu0 0.0
    %1288 = vmatpush1.xpose.msra.mxu0 0.0
    %1289 = vmatprep.subr.mxu0 0.0
    %1290 = vmatpush1.xpose.msra.mxu0 0.0
    %1291 = vmatprep.subr.mxu0 0.0
    %1292 = vmatpush1.xpose.msra.mxu0 0.0
    %1293 = vmatprep.subr.mxu0 0.0
    %1294 = vmatpush1.xpose.msra.mxu0 0.0
    %1295 = vmatprep.subr.mxu0 0.0
    %1296 = vmatpush1.xpose.msra.mxu0 0.0
    %1297 = vmatprep.subr.mxu0 0.0
    %1298 = vmatpush1.xpose.msra.mxu0 %v1265
    %1299 = vmatprep.subr.mxu0 0.0
    %1300 = vmatpush2.xpose.msra.mxu0 0.0
    %1301 = vmatprep.subr.mxu0 0.0
    %1302 = vmatpush2.xpose.msra.mxu0 0.0
    %1303 = vmatprep.subr.mxu0 0.0
    %1304 = vmatpush2.xpose.msra.mxu0 0.0
    %1305 = vmatprep.subr.mxu0 0.0
    %1306 = vmatpush2.xpose.msra.mxu0 0.0
    %1307 = vmatprep.subr.mxu0 0.0
    %1308 = vmatpush2.xpose.msra.mxu0 0.0
    %1309 = vmatprep.subr.mxu0 0.0
    %1310 = vmatpush2.xpose.msra.mxu0 0.0
    %1311 = vmatprep.subr.mxu0 0.0
    %1312 = vmatpush2.xpose.msra.mxu0 0.0
    %1313 = vmatprep.subr.mxu0 0.0
    %1314 = vmatpush2.xpose.msra.mxu0 0.0
    %1315 = vmatprep.subr.mxu0 0.0
    %1316 = vmatpush2.xpose.msra.mxu0 0.0
    %1317 = vmatprep.subr.mxu0 0.0
    %1318 = vmatpush2.xpose.msra.mxu0 0.0
    %1319 = vmatprep.subr.mxu0 0.0
    %1320 = vmatpush2.xpose.msra.mxu0 0.0
    %1321 = vmatprep.subr.mxu0 0.0
    %1322 = vmatpush2.xpose.msra.mxu0 0.0
    %1323 = vmatprep.subr.mxu0 0.0
    %1324 = vmatpush2.xpose.msra.mxu0 0.0
    %1325 = vmatprep.subr.mxu0 0.0
    %1326 = vmatpush2.xpose.msra.mxu0 0.0
    %1327 = vmatprep.subr.mxu0 0.0
    %1328 = vmatpush2.xpose.msra.mxu0 0.0
    %1329 = vmatprep.subr.mxu0 0.0
    %1330 = vmatpush2.xpose.msra.mxu0 0.0
    %1331 = vmatprep.mubr.f32.mxu0 0.0
    %1332 = vmatmul.mubr.f32.gmra.mxu0 %v1263
    %v1333 = vpop.f32.mrf.mxu0
    %v1334 = vadd.f32 0.0, %v1333
    %v1335 = vpop.f32.mrf.mxu0
    %1336 = vdwg.mxu0
    %v1337 = vmul.f32 %v1256, 0.35355338
    %v1338 = vmul.f32 %v1334, 0.35355338
    %v1339 = vadd.f32 %v1337, %v179
    %v1340 = vadd.f32 %v1338, %v179
    %v1341 = vsel %vm183, %v1339, -inf
    %1342 = vmax.xlane.f32.xlu0 %v1341
    %v1343 = vpop.xlane.xlu0 %1342
    %v1344 = vsel %vm183, %v1340, -inf
    %1345 = vmax.xlane.f32.xlu0 %v1344
    %v1346 = vpop.xlane.xlu0 %1345
    %v1347 = vsub.f32 %v1339, %v1343
    %v1348 = vsub.f32 %v1340, %v1346
    %v1349 = vmul.f32 %v1347, 1.442695
    %v1350 = vpow.pop %v1349
    %v1351 = vmul.f32 %v1348, 1.442695
    %v1352 = vpow.pop %v1351
    %v1353 = vsel %vm183, %v1350, 0.0
    %1354 = vadd.xlane.f32.xlu0 %v1353
    %v1355 = vpop.xlane.xlu0 %1354
    %v1356 = vsel %vm183, %v1352, 0.0
    %1357 = vadd.xlane.f32.xlu0 %v1356
    %v1358 = vpop.xlane.xlu0 %1357
    %v1359 = vrcp.pop %v1355
    %v1360 = vrcp.pop %v1358
    %v1361 = vmul.f32 %v1350, %v1359
    %v1362 = vmul.f32 %v1352, %v1360
    %1363 = vrot.lane.b32.xlu0 %v166, 40
    %v1364 = vpop.permute.xlu0 %1363
    %v1367 = vsel %vm183, %v1361, 0
    %1369 = vmatprep.subr.mxu0 0.0
    %1370 = vmatpush1.msra.mxu0 0.0
    %1371 = vmatprep.subr.mxu0 0.0
    %1372 = vmatpush1.msra.mxu0 0.0
    %1373 = vmatprep.subr.mxu0 0.0
    %1374 = vmatpush1.msra.mxu0 0.0
    %1375 = vmatprep.subr.mxu0 0.0
    %1376 = vmatpush1.msra.mxu0 0.0
    %1377 = vmatprep.subr.mxu0 0.0
    %1378 = vmatpush1.msra.mxu0 0.0
    %1379 = vmatprep.subr.mxu0 0.0
    %1380 = vmatpush1.msra.mxu0 0.0
    %1381 = vmatprep.subr.mxu0 0.0
    %1382 = vmatpush1.msra.mxu0 0.0
    %1383 = vmatprep.subr.mxu0 0.0
    %1384 = vmatpush1.msra.mxu0 0.0
    %1385 = vmatprep.subr.mxu0 0.0
    %1386 = vmatpush1.msra.mxu0 0.0
    %1387 = vmatprep.subr.mxu0 0.0
    %1388 = vmatpush1.msra.mxu0 0.0
    %1389 = vmatprep.subr.mxu0 0.0
    %1390 = vmatpush1.msra.mxu0 0.0
    %1391 = vmatprep.subr.mxu0 0.0
    %1392 = vmatpush1.msra.mxu0 0.0
    %1393 = vmatprep.subr.mxu0 0.0
    %1394 = vmatpush1.msra.mxu0 0.0
    %1395 = vmatprep.subr.mxu0 0.0
    %1396 = vmatpush1.msra.mxu0 0.0
    %1397 = vmatprep.subr.mxu0 0.0
    %1398 = vmatpush1.msra.mxu0 0.0
    %1399 = vmatprep.subr.mxu0 0.0
    %1400 = vmatpush1.msra.mxu0 %v1364
    %1401 = vmatprep.subr.mxu0 0.0
    %1402 = vmatpush2.msra.mxu0 0.0
    %1403 = vmatprep.subr.mxu0 0.0
    %1404 = vmatpush2.msra.mxu0 0.0
    %1405 = vmatprep.subr.mxu0 0.0
    %1406 = vmatpush2.msra.mxu0 0.0
    %1407 = vmatprep.subr.mxu0 0.0
    %1408 = vmatpush2.msra.mxu0 0.0
    %1409 = vmatprep.subr.mxu0 0.0
    %1410 = vmatpush2.msra.mxu0 0.0
    %1411 = vmatprep.subr.mxu0 0.0
    %1412 = vmatpush2.msra.mxu0 0.0
    %1413 = vmatprep.subr.mxu0 0.0
    %1414 = vmatpush2.msra.mxu0 0.0
    %1415 = vmatprep.subr.mxu0 0.0
    %1416 = vmatpush2.msra.mxu0 0.0
    %1417 = vmatprep.subr.mxu0 0.0
    %1418 = vmatpush2.msra.mxu0 0.0
    %1419 = vmatprep.subr.mxu0 0.0
    %1420 = vmatpush2.msra.mxu0 0.0
    %1421 = vmatprep.subr.mxu0 0.0
    %1422 = vmatpush2.msra.mxu0 0.0
    %1423 = vmatprep.subr.mxu0 0.0
    %1424 = vmatpush2.msra.mxu0 0.0
    %1425 = vmatprep.subr.mxu0 0.0
    %1426 = vmatpush2.msra.mxu0 0.0
    %1427 = vmatprep.subr.mxu0 0.0
    %1428 = vmatpush2.msra.mxu0 0.0
    %1429 = vmatprep.subr.mxu0 0.0
    %1430 = vmatpush2.msra.mxu0 0.0
    %1431 = vmatprep.subr.mxu0 0.0
    %1432 = vmatpush2.msra.mxu0 0.0
    %1433 = vmatprep.mubr.f32.mxu0 0.0
    %1434 = vmatmul.mubr.f32.gmra.mxu0 %v1367
    %v1435 = vpop.f32.mrf.mxu0
    %v1436 = vadd.f32 0.0, %v1435
    %v1437 = vpop.f32.mrf.mxu0
    %1438 = vdwg.mxu0
    %1439 = vrot.lane.b32.xlu0 %v171, 40
    %v1440 = vpop.permute.xlu0 %1439
    %v1443 = vsel %vm183, %v1362, 0
    %1445 = vmatprep.subr.mxu0 0.0
    %1446 = vmatpush1.msra.mxu0 0.0
    %1447 = vmatprep.subr.mxu0 0.0
    %1448 = vmatpush1.msra.mxu0 0.0
    %1449 = vmatprep.subr.mxu0 0.0
    %1450 = vmatpush1.msra.mxu0 0.0
    %1451 = vmatprep.subr.mxu0 0.0
    %1452 = vmatpush1.msra.mxu0 0.0
    %1453 = vmatprep.subr.mxu0 0.0
    %1454 = vmatpush1.msra.mxu0 0.0
    %1455 = vmatprep.subr.mxu0 0.0
    %1456 = vmatpush1.msra.mxu0 0.0
    %1457 = vmatprep.subr.mxu0 0.0
    %1458 = vmatpush1.msra.mxu0 0.0
    %1459 = vmatprep.subr.mxu0 0.0
    %1460 = vmatpush1.msra.mxu0 0.0
    %1461 = vmatprep.subr.mxu0 0.0
    %1462 = vmatpush1.msra.mxu0 0.0
    %1463 = vmatprep.subr.mxu0 0.0
    %1464 = vmatpush1.msra.mxu0 0.0
    %1465 = vmatprep.subr.mxu0 0.0
    %1466 = vmatpush1.msra.mxu0 0.0
    %1467 = vmatprep.subr.mxu0 0.0
    %1468 = vmatpush1.msra.mxu0 0.0
    %1469 = vmatprep.subr.mxu0 0.0
    %1470 = vmatpush1.msra.mxu0 0.0
    %1471 = vmatprep.subr.mxu0 0.0
    %1472 = vmatpush1.msra.mxu0 0.0
    %1473 = vmatprep.subr.mxu0 0.0
    %1474 = vmatpush1.msra.mxu0 0.0
    %1475 = vmatprep.subr.mxu0 0.0
    %1476 = vmatpush1.msra.mxu0 %v1440
    %1477 = vmatprep.subr.mxu0 0.0
    %1478 = vmatpush2.msra.mxu0 0.0
    %1479 = vmatprep.subr.mxu0 0.0
    %1480 = vmatpush2.msra.mxu0 0.0
    %1481 = vmatprep.subr.mxu0 0.0
    %1482 = vmatpush2.msra.mxu0 0.0
    %1483 = vmatprep.subr.mxu0 0.0
    %1484 = vmatpush2.msra.mxu0 0.0
    %1485 = vmatprep.subr.mxu0 0.0
    %1486 = vmatpush2.msra.mxu0 0.0
    %1487 = vmatprep.subr.mxu0 0.0
    %1488 = vmatpush2.msra.mxu0 0.0
    %1489 = vmatprep.subr.mxu0 0.0
    %1490 = vmatpush2.msra.mxu0 0.0
    %1491 = vmatprep.subr.mxu0 0.0
    %1492 = vmatpush2.msra.mxu0 0.0
    %1493 = vmatprep.subr.mxu0 0.0
    %1494 = vmatpush2.msra.mxu0 0.0
    %1495 = vmatprep.subr.mxu0 0.0
    %1496 = vmatpush2.msra.mxu0 0.0
    %1497 = vmatprep.subr.mxu0 0.0
    %1498 = vmatpush2.msra.mxu0 0.0
    %1499 = vmatprep.subr.mxu0 0.0
    %1500 = vmatpush2.msra.mxu0 0.0
    %1501 = vmatprep.subr.mxu0 0.0
    %1502 = vmatpush2.msra.mxu0 0.0
    %1503 = vmatprep.subr.mxu0 0.0
    %1504 = vmatpush2.msra.mxu0 0.0
    %1505 = vmatprep.subr.mxu0 0.0
    %1506 = vmatpush2.msra.mxu0 0.0
    %1507 = vmatprep.subr.mxu0 0.0
    %1508 = vmatpush2.msra.mxu0 0.0
    %1509 = vmatprep.mubr.f32.mxu0 0.0
    %1510 = vmatmul.mubr.f32.gmra.mxu0 %v1443
    %v1511 = vpop.f32.mrf.mxu0
    %v1512 = vadd.f32 0.0, %v1511
    %v1513 = vpop.f32.mrf.mxu0
    %1514 = vdwg.mxu0
    %1517 = vrot.lane.b32.xlu0 %v768, 8
    %v1518 = vpop.permute.xlu0 %1517
    %1519 = vrot.lane.b32.xlu0 %v844, 8
    %v1520 = vpop.permute.xlu0 %1519
    %1525 = vrot.lane.b32.xlu0 %v1102, 16
    %v1526 = vpop.permute.xlu0 %1525
    %1527 = vrot.lane.b32.xlu0 %v1178, 16
    %v1528 = vpop.permute.xlu0 %1527
    %1533 = vrot.lane.b32.xlu0 %v1436, 24
    %v1534 = vpop.permute.xlu0 %1533
    %1535 = vrot.lane.b32.xlu0 %v1512, 24
    %v1536 = vpop.permute.xlu0 %1535
    %v1539 = vsel %vm183, %v434, %v1518
    %v1540 = vsel %vm183, %v510, %v1520
    %vm1541 = vcmask 130048
    %v1542 = vsel %vm1541, %v1539, %v1526
    %v1543 = vsel %vm1541, %v1540, %v1528
    %vm1544 = vcmask 195584
    %v1545 = vsel %vm1544, %v1542, %v1534
    %v1546 = vsel %vm1544, %v1543, %v1536
    %v1547 = vld [vmem:[%s3] sm:$0xff]
    %v1548 = vld [vmem:[%s3 + $0x8] sm:$0xff]
    %v1549 = vld [vmem:[%s3 + $0x10] sm:$0xff]
    %v1550 = vld [vmem:[%s3 + $0x18] sm:$0xff]
    %v1551 = vld [vmem:[%s4] sm:$0x1]
    %v1553 = vlaneseq
    %v1554 = vshrl.u32 %v1553, 7
    %v1555 = vsub.s32 0, %v1554
    %v1556 = vrot.slane %v1551, %v1555
    %v1559 = vsel %vm92, %v1545, 0
    %v1562 = vsel %vm92, %v1546, 0
    %1564 = vmatprep.subr.mxu0 0.0
    %1565 = vmatpush1.msra.mxu0 0.0
    %1566 = vmatprep.subr.mxu0 0.0
    %1567 = vmatpush1.msra.mxu0 0.0
    %1568 = vmatprep.subr.mxu0 0.0
    %1569 = vmatpush1.msra.mxu0 0.0
    %1570 = vmatprep.subr.mxu0 0.0
    %1571 = vmatpush1.msra.mxu0 0.0
    %1572 = vmatprep.subr.mxu0 0.0
    %1573 = vmatpush1.msra.mxu0 0.0
    %1574 = vmatprep.subr.mxu0 0.0
    %1575 = vmatpush1.msra.mxu0 0.0
    %1576 = vmatprep.subr.mxu0 0.0
    %1577 = vmatpush1.msra.mxu0 0.0
    %1578 = vmatprep.subr.mxu0 0.0
    %1579 = vmatpush1.msra.mxu0 0.0
    %1580 = vmatprep.subr.mxu0 0.0
    %1581 = vmatpush1.msra.mxu0 0.0
    %1582 = vmatprep.subr.mxu0 0.0
    %1583 = vmatpush1.msra.mxu0 0.0
    %1584 = vmatprep.subr.mxu0 0.0
    %1585 = vmatpush1.msra.mxu0 0.0
    %1586 = vmatprep.subr.mxu0 0.0
    %1587 = vmatpush1.msra.mxu0 0.0
    %1588 = vmatprep.subr.mxu0 0.0
    %1589 = vmatpush1.msra.mxu0 %v1550
    %1590 = vmatprep.subr.mxu0 0.0
    %1591 = vmatpush1.msra.mxu0 %v1549
    %1592 = vmatprep.subr.mxu0 0.0
    %1593 = vmatpush1.msra.mxu0 %v1548
    %1594 = vmatprep.subr.mxu0 0.0
    %1595 = vmatpush1.msra.mxu0 %v1547
    %1596 = vmatprep.subr.mxu0 0.0
    %1597 = vmatpush2.msra.mxu0 0.0
    %1598 = vmatprep.subr.mxu0 0.0
    %1599 = vmatpush2.msra.mxu0 0.0
    %1600 = vmatprep.subr.mxu0 0.0
    %1601 = vmatpush2.msra.mxu0 0.0
    %1602 = vmatprep.subr.mxu0 0.0
    %1603 = vmatpush2.msra.mxu0 0.0
    %1604 = vmatprep.subr.mxu0 0.0
    %1605 = vmatpush2.msra.mxu0 0.0
    %1606 = vmatprep.subr.mxu0 0.0
    %1607 = vmatpush2.msra.mxu0 0.0
    %1608 = vmatprep.subr.mxu0 0.0
    %1609 = vmatpush2.msra.mxu0 0.0
    %1610 = vmatprep.subr.mxu0 0.0
    %1611 = vmatpush2.msra.mxu0 0.0
    %1612 = vmatprep.subr.mxu0 0.0
    %1613 = vmatpush2.msra.mxu0 0.0
    %1614 = vmatprep.subr.mxu0 0.0
    %1615 = vmatpush2.msra.mxu0 0.0
    %1616 = vmatprep.subr.mxu0 0.0
    %1617 = vmatpush2.msra.mxu0 0.0
    %1618 = vmatprep.subr.mxu0 0.0
    %1619 = vmatpush2.msra.mxu0 0.0
    %1620 = vmatprep.subr.mxu0 0.0
    %1621 = vmatpush2.msra.mxu0 0.0
    %1622 = vmatprep.subr.mxu0 0.0
    %1623 = vmatpush2.msra.mxu0 0.0
    %1624 = vmatprep.subr.mxu0 0.0
    %1625 = vmatpush2.msra.mxu0 0.0
    %1626 = vmatprep.subr.mxu0 0.0
    %1627 = vmatpush2.msra.mxu0 0.0
    %1628 = vmatprep.mubr.f32.mxu0 0.0
    %1629 = vmatmul.mubr.f32.gmra.mxu0 %v1559
    %v1630 = vpop.f32.mrf.mxu0
    %v1631 = vadd.f32 %v1556, %v1630
    %v1632 = vpop.f32.mrf.mxu0
    %1633 = vmatprep.mubr.f32.mxu0 0.0
    %1634 = vmatmul.mubr.f32.gmra.mxu0 %v1562
    %v1635 = vpop.f32.mrf.mxu0
    %v1636 = vadd.f32 %v1556, %v1635
    %v1637 = vpop.f32.mrf.mxu0
    %1638 = vdwg.mxu0
    %v1639 = vadd.f32 %v79, %v1631
    %v1640 = vadd.f32 %v80, %v1636
    %v1641 = vld [vmem:[%s5] sm:$0x1]
    %v1642 = vld [vmem:[%s6] sm:$0x1]
    %v1643 = vsel %vm92, %v1639, 0.0
    %1644 = vadd.xlane.f32.xlu0 %v1643
    %v1645 = vpop.xlane.xlu0 %1644
    %v1646 = vsel %vm92, %v1640, 0.0
    %1647 = vadd.xlane.f32.xlu0 %v1646
    %v1648 = vpop.xlane.xlu0 %1647
    %v1649 = vrcp.pop 32.0
    %v1650 = vmul.f32 %v1645, %v1649
    %v1651 = vmul.f32 %v1648, %v1649
    %v1652 = vsub.f32 %v1639, %v1650
    %v1653 = vsub.f32 %v1640, %v1651
    %v1654 = vmul.f32 %v1652, %v1652
    %v1655 = vmul.f32 %v1653, %v1653
    %v1656 = vsel %vm92, %v1654, 0.0
    %1657 = vadd.xlane.f32.xlu0 %v1656
    %v1658 = vpop.xlane.xlu0 %1657
    %v1659 = vsel %vm92, %v1655, 0.0
    %1660 = vadd.xlane.f32.xlu0 %v1659
    %v1661 = vpop.xlane.xlu0 %1660
    %v1662 = vmul.f32 %v1658, %v1649
    %v1663 = vmul.f32 %v1661, %v1649
    %v1664 = vadd.f32 %v1662, 1e-05
    %v1665 = vadd.f32 %v1663, 1e-05
    %v1666 = vrsqrt.pop %v1664
    %v1667 = vrsqrt.pop %v1665
    %v1668 = vmul.f32 %v1652, %v1666
    %v1669 = vmul.f32 %v1653, %v1667
    %v1671 = vlaneseq
    %v1672 = vshrl.u32 %v1671, 7
    %v1673 = vsub.s32 0, %v1672
    %v1674 = vrot.slane %v1641, %v1673
    %v1676 = vmul.f32 %v1668, %v1674
    %v1677 = vmul.f32 %v1669, %v1674
    %v1679 = vlaneseq
    %v1680 = vshrl.u32 %v1679, 7
    %v1681 = vsub.s32 0, %v1680
    %v1682 = vrot.slane %v1642, %v1681
    %v1684 = vadd.f32 %v1676, %v1682
    %v1685 = vadd.f32 %v1677, %v1682
    %v1686 = vld [vmem:[%s7] sm:$0xff]
    %v1687 = vld [vmem:[%s7 + $0x8] sm:$0xff]
    %v1688 = vld [vmem:[%s7 + $0x10] sm:$0xff]
    %v1689 = vld [vmem:[%s7 + $0x18] sm:$0xff]
    %v1690 = vld [vmem:[%s8] sm:$0x1]
    %v1692 = vlaneseq
    %v1693 = vshrl.u32 %v1692, 7
    %v1694 = vsub.s32 0, %v1693
    %v1695 = vrot.slane %v1690, %v1694
    %v1698 = vsel %vm92, %v1684, 0
    %v1701 = vsel %vm92, %v1685, 0
    %1703 = vmatprep.subr.mxu0 0.0
    %1704 = vmatpush1.msra.mxu0 0.0
    %1705 = vmatprep.subr.mxu0 0.0
    %1706 = vmatpush1.msra.mxu0 0.0
    %1707 = vmatprep.subr.mxu0 0.0
    %1708 = vmatpush1.msra.mxu0 0.0
    %1709 = vmatprep.subr.mxu0 0.0
    %1710 = vmatpush1.msra.mxu0 0.0
    %1711 = vmatprep.subr.mxu0 0.0
    %1712 = vmatpush1.msra.mxu0 0.0
    %1713 = vmatprep.subr.mxu0 0.0
    %1714 = vmatpush1.msra.mxu0 0.0
    %1715 = vmatprep.subr.mxu0 0.0
    %1716 = vmatpush1.msra.mxu0 0.0
    %1717 = vmatprep.subr.mxu0 0.0
    %1718 = vmatpush1.msra.mxu0 0.0
    %1719 = vmatprep.subr.mxu0 0.0
    %1720 = vmatpush1.msra.mxu0 0.0
    %1721 = vmatprep.subr.mxu0 0.0
    %1722 = vmatpush1.msra.mxu0 0.0
    %1723 = vmatprep.subr.mxu0 0.0
    %1724 = vmatpush1.msra.mxu0 0.0
    %1725 = vmatprep.subr.mxu0 0.0
    %1726 = vmatpush1.msra.mxu0 0.0
    %1727 = vmatprep.subr.mxu0 0.0
    %1728 = vmatpush1.msra.mxu0 %v1689
    %1729 = vmatprep.subr.mxu0 0.0
    %1730 = vmatpush1.msra.mxu0 %v1688
    %1731 = vmatprep.subr.mxu0 0.0
    %1732 = vmatpush1.msra.mxu0 %v1687
    %1733 = vmatprep.subr.mxu0 0.0
    %1734 = vmatpush1.msra.mxu0 %v1686
    %1735 = vmatprep.subr.mxu0 0.0
    %1736 = vmatpush2.msra.mxu0 0.0
    %1737 = vmatprep.subr.mxu0 0.0
    %1738 = vmatpush2.msra.mxu0 0.0
    %1739 = vmatprep.subr.mxu0 0.0
    %1740 = vmatpush2.msra.mxu0 0.0
    %1741 = vmatprep.subr.mxu0 0.0
    %1742 = vmatpush2.msra.mxu0 0.0
    %1743 = vmatprep.subr.mxu0 0.0
    %1744 = vmatpush2.msra.mxu0 0.0
    %1745 = vmatprep.subr.mxu0 0.0
    %1746 = vmatpush2.msra.mxu0 0.0
    %1747 = vmatprep.subr.mxu0 0.0
    %1748 = vmatpush2.msra.mxu0 0.0
    %1749 = vmatprep.subr.mxu0 0.0
    %1750 = vmatpush2.msra.mxu0 0.0
    %1751 = vmatprep.subr.mxu0 0.0
    %1752 = vmatpush2.msra.mxu0 0.0
    %1753 = vmatprep.subr.mxu0 0.0
    %1754 = vmatpush2.msra.mxu0 0.0
    %1755 = vmatprep.subr.mxu0 0.0
    %1756 = vmatpush2.msra.mxu0 0.0
    %1757 = vmatprep.subr.mxu0 0.0
    %1758 = vmatpush2.msra.mxu0 0.0
    %1759 = vmatprep.subr.mxu0 0.0
    %1760 = vmatpush2.msra.mxu0 0.0
    %1761 = vmatprep.subr.mxu0 0.0
    %1762 = vmatpush2.msra.mxu0 0.0
    %1763 = vmatprep.subr.mxu0 0.0
    %1764 = vmatpush2.msra.mxu0 0.0
    %1765 = vmatprep.subr.mxu0 0.0
    %1766 = vmatpush2.msra.mxu0 0.0
    %1767 = vmatprep.mubr.f32.mxu0 0.0
    %1768 = vmatmul.mubr.f32.gmra.mxu0 %v1698
    %v1769 = vpop.f32.mrf.mxu0
    %v1770 = vadd.f32 %v1695, %v1769
    %v1771 = vpop.f32.mrf.mxu0
    %1772 = vmatprep.mubr.f32.mxu0 0.0
    %1773 = vmatmul.mubr.f32.gmra.mxu0 %v1701
    %v1774 = vpop.f32.mrf.mxu0
    %v1775 = vadd.f32 %v1695, %v1774
    %v1776 = vpop.f32.mrf.mxu0
    %1777 = vdwg.mxu0
    %v1778 = vmax.f32 %v1770, 0.0
    %v1779 = vmax.f32 %v1775, 0.0
    %v1780 = vld [vmem:[%s9] sm:$0xff]
    %v1781 = vld [vmem:[%s9 + $0x8] sm:$0xff]
    %v1782 = vld [vmem:[%s9 + $0x10] sm:$0xff]
    %v1783 = vld [vmem:[%s9 + $0x18] sm:$0xff]
    %v1784 = vld [vmem:[%s9 + $0x20] sm:$0xff]
    %v1785 = vld [vmem:[%s9 + $0x28] sm:$0xff]
    %v1786 = vld [vmem:[%s9 + $0x30] sm:$0xff]
    %v1787 = vld [vmem:[%s9 + $0x38] sm:$0xff]
    %v1788 = vld [vmem:[%s10] sm:$0x1]
    %v1790 = vlaneseq
    %v1791 = vshrl.u32 %v1790, 7
    %v1792 = vsub.s32 0, %v1791
    %v1793 = vrot.slane %v1788, %v1792
    %vm1795 = vcmask 523264
    %v1797 = vsel %vm1795, %v1778, 0
    %v1800 = vsel %vm1795, %v1779, 0
    %1802 = vmatprep.subr.mxu0 0.0
    %1803 = vmatpush1.msra.mxu0 0.0
    %1804 = vmatprep.subr.mxu0 0.0
    %1805 = vmatpush1.msra.mxu0 0.0
    %1806 = vmatprep.subr.mxu0 0.0
    %1807 = vmatpush1.msra.mxu0 0.0
    %1808 = vmatprep.subr.mxu0 0.0
    %1809 = vmatpush1.msra.mxu0 0.0
    %1810 = vmatprep.subr.mxu0 0.0
    %1811 = vmatpush1.msra.mxu0 0.0
    %1812 = vmatprep.subr.mxu0 0.0
    %1813 = vmatpush1.msra.mxu0 0.0
    %1814 = vmatprep.subr.mxu0 0.0
    %1815 = vmatpush1.msra.mxu0 0.0
    %1816 = vmatprep.subr.mxu0 0.0
    %1817 = vmatpush1.msra.mxu0 0.0
    %1818 = vmatprep.subr.mxu0 0.0
    %1819 = vmatpush1.msra.mxu0 %v1787
    %1820 = vmatprep.subr.mxu0 0.0
    %1821 = vmatpush1.msra.mxu0 %v1786
    %1822 = vmatprep.subr.mxu0 0.0
    %1823 = vmatpush1.msra.mxu0 %v1785
    %1824 = vmatprep.subr.mxu0 0.0
    %1825 = vmatpush1.msra.mxu0 %v1784
    %1826 = vmatprep.subr.mxu0 0.0
    %1827 = vmatpush1.msra.mxu0 %v1783
    %1828 = vmatprep.subr.mxu0 0.0
    %1829 = vmatpush1.msra.mxu0 %v1782
    %1830 = vmatprep.subr.mxu0 0.0
    %1831 = vmatpush1.msra.mxu0 %v1781
    %1832 = vmatprep.subr.mxu0 0.0
    %1833 = vmatpush1.msra.mxu0 %v1780
    %1834 = vmatprep.subr.mxu0 0.0
    %1835 = vmatpush2.msra.mxu0 0.0
    %1836 = vmatprep.subr.mxu0 0.0
    %1837 = vmatpush2.msra.mxu0 0.0
    %1838 = vmatprep.subr.mxu0 0.0
    %1839 = vmatpush2.msra.mxu0 0.0
    %1840 = vmatprep.subr.mxu0 0.0
    %1841 = vmatpush2.msra.mxu0 0.0
    %1842 = vmatprep.subr.mxu0 0.0
    %1843 = vmatpush2.msra.mxu0 0.0
    %1844 = vmatprep.subr.mxu0 0.0
    %1845 = vmatpush2.msra.mxu0 0.0
    %1846 = vmatprep.subr.mxu0 0.0
    %1847 = vmatpush2.msra.mxu0 0.0
    %1848 = vmatprep.subr.mxu0 0.0
    %1849 = vmatpush2.msra.mxu0 0.0
    %1850 = vmatprep.subr.mxu0 0.0
    %1851 = vmatpush2.msra.mxu0 0.0
    %1852 = vmatprep.subr.mxu0 0.0
    %1853 = vmatpush2.msra.mxu0 0.0
    %1854 = vmatprep.subr.mxu0 0.0
    %1855 = vmatpush2.msra.mxu0 0.0
    %1856 = vmatprep.subr.mxu0 0.0
    %1857 = vmatpush2.msra.mxu0 0.0
    %1858 = vmatprep.subr.mxu0 0.0
    %1859 = vmatpush2.msra.mxu0 0.0
    %1860 = vmatprep.subr.mxu0 0.0
    %1861 = vmatpush2.msra.mxu0 0.0
    %1862 = vmatprep.subr.mxu0 0.0
    %1863 = vmatpush2.msra.mxu0 0.0
    %1864 = vmatprep.subr.mxu0 0.0
    %1865 = vmatpush2.msra.mxu0 0.0
    %1866 = vmatprep.mubr.f32.mxu0 0.0
    %1867 = vmatmul.mubr.f32.gmra.mxu0 %v1797
    %v1868 = vpop.f32.mrf.mxu0
    %v1869 = vadd.f32 %v1793, %v1868
    %v1870 = vpop.f32.mrf.mxu0
    %1871 = vmatprep.mubr.f32.mxu0 0.0
    %1872 = vmatmul.mubr.f32.gmra.mxu0 %v1800
    %v1873 = vpop.f32.mrf.mxu0
    %v1874 = vadd.f32 %v1793, %v1873
    %v1875 = vpop.f32.mrf.mxu0
    %1876 = vdwg.mxu0
    %v1877 = vadd.f32 %v1684, %v1869
    %v1878 = vadd.f32 %v1685, %v1874
    %v1879 = vld [vmem:[%s11] sm:$0x1]
    %v1880 = vld [vmem:[%s12] sm:$0x1]
    %v1881 = vsel %vm92, %v1877, 0.0
    %1882 = vadd.xlane.f32.xlu0 %v1881
    %v1883 = vpop.xlane.xlu0 %1882
    %v1884 = vsel %vm92, %v1878, 0.0
    %1885 = vadd.xlane.f32.xlu0 %v1884
    %v1886 = vpop.xlane.xlu0 %1885
    %v1887 = vmul.f32 %v1883, %v1649
    %v1888 = vmul.f32 %v1886, %v1649
    %v1889 = vsub.f32 %v1877, %v1887
    %v1890 = vsub.f32 %v1878, %v1888
    %v1891 = vmul.f32 %v1889, %v1889
    %v1892 = vmul.f32 %v1890, %v1890
    %v1893 = vsel %vm92, %v1891, 0.0
    %1894 = vadd.xlane.f32.xlu0 %v1893
    %v1895 = vpop.xlane.xlu0 %1894
    %v1896 = vsel %vm92, %v1892, 0.0
    %1897 = vadd.xlane.f32.xlu0 %v1896
    %v1898 = vpop.xlane.xlu0 %1897
    %v1899 = vmul.f32 %v1895, %v1649
    %v1900 = vmul.f32 %v1898, %v1649
    %v1901 = vadd.f32 %v1899, 1e-05
    %v1902 = vadd.f32 %v1900, 1e-05
    %v1903 = vrsqrt.pop %v1901
    %v1904 = vrsqrt.pop %v1902
    %v1905 = vmul.f32 %v1889, %v1903
    %v1906 = vmul.f32 %v1890, %v1904
    %v1908 = vlaneseq
    %v1909 = vshrl.u32 %v1908, 7
    %v1910 = vsub.s32 0, %v1909
    %v1911 = vrot.slane %v1879, %v1910
    %v1913 = vmul.f32 %v1905, %v1911
    %v1914 = vmul.f32 %v1906, %v1911
    %v1916 = vlaneseq
    %v1917 = vshrl.u32 %v1916, 7
    %v1918 = vsub.s32 0, %v1917
    %v1919 = vrot.slane %v1880, %v1918
    %v1921 = vadd.f32 %v1913, %v1919
    %v1922 = vadd.f32 %v1914, %v1919
    %v1923 = vld [vmem:[#allocation5] sm:$0xff]
    %v1924 = vld [vmem:[#allocation5 + $0x8] sm:$0xff]
    %v1925 = vld [vmem:[#allocation5 + $0x10] sm:$0xff]
    %v1926 = vld [vmem:[#allocation5 + $0x18] sm:$0xff]
    %v1927 = vld [vmem:[%s14] sm:$0x1]
    %v1929 = vlaneseq
    %v1930 = vshrl.u32 %v1929, 7
    %v1931 = vsub.s32 0, %v1930
    %v1932 = vrot.slane %v1927, %v1931
    %v1935 = vsel %vm92, %v1921, 0
    %v1938 = vsel %vm92, %v1922, 0
    %1940 = vmatprep.subr.mxu0 0.0
    %1941 = vmatpush1.msra.mxu0 0.0
    %1942 = vmatprep.subr.mxu0 0.0
    %1943 = vmatpush1.msra.mxu0 0.0
    %1944 = vmatprep.subr.mxu0 0.0
    %1945 = vmatpush1.msra.mxu0 0.0
    %1946 = vmatprep.subr.mxu0 0.0
    %1947 = vmatpush1.msra.mxu0 0.0
    %1948 = vmatprep.subr.mxu0 0.0
    %1949 = vmatpush1.msra.mxu0 0.0
    %1950 = vmatprep.subr.mxu0 0.0
    %1951 = vmatpush1.msra.mxu0 0.0
    %1952 = vmatprep.subr.mxu0 0.0
    %1953 = vmatpush1.msra.mxu0 0.0
    %1954 = vmatprep.subr.mxu0 0.0
    %1955 = vmatpush1.msra.mxu0 0.0
    %1956 = vmatprep.subr.mxu0 0.0
    %1957 = vmatpush1.msra.mxu0 0.0
    %1958 = vmatprep.subr.mxu0 0.0
    %1959 = vmatpush1.msra.mxu0 0.0
    %1960 = vmatprep.subr.mxu0 0.0
    %1961 = vmatpush1.msra.mxu0 0.0
    %1962 = vmatprep.subr.mxu0 0.0
    %1963 = vmatpush1.msra.mxu0 0.0
    %1964 = vmatprep.subr.mxu0 0.0
    %1965 = vmatpush1.msra.mxu0 %v1926
    %1966 = vmatprep.subr.mxu0 0.0
    %1967 = vmatpush1.msra.mxu0 %v1925
    %1968 = vmatprep.subr.mxu0 0.0
    %1969 = vmatpush1.msra.mxu0 %v1924
    %1970 = vmatprep.subr.mxu0 0.0
    %1971 = vmatpush1.msra.mxu0 %v1923
    %1972 = vmatprep.subr.mxu0 0.0
    %1973 = vmatpush2.msra.mxu0 0.0
    %1974 = vmatprep.subr.mxu0 0.0
    %1975 = vmatpush2.msra.mxu0 0.0
    %1976 = vmatprep.subr.mxu0 0.0
    %1977 = vmatpush2.msra.mxu0 0.0
    %1978 = vmatprep.subr.mxu0 0.0
    %1979 = vmatpush2.msra.mxu0 0.0
    %1980 = vmatprep.subr.mxu0 0.0
    %1981 = vmatpush2.msra.mxu0 0.0
    %1982 = vmatprep.subr.mxu0 0.0
    %1983 = vmatpush2.msra.mxu0 0.0
    %1984 = vmatprep.subr.mxu0 0.0
    %1985 = vmatpush2.msra.mxu0 0.0
    %1986 = vmatprep.subr.mxu0 0.0
    %1987 = vmatpush2.msra.mxu0 0.0
    %1988 = vmatprep.subr.mxu0 0.0
    %1989 = vmatpush2.msra.mxu0 0.0
    %1990 = vmatprep.subr.mxu0 0.0
    %1991 = vmatpush2.msra.mxu0 0.0
    %1992 = vmatprep.subr.mxu0 0.0
    %1993 = vmatpush2.msra.mxu0 0.0
    %1994 = vmatprep.subr.mxu0 0.0
    %1995 = vmatpush2.msra.mxu0 0.0
    %1996 = vmatprep.subr.mxu0 0.0
    %1997 = vmatpush2.msra.mxu0 0.0
    %1998 = vmatprep.subr.mxu0 0.0
    %1999 = vmatpush2.msra.mxu0 0.0
    %2000 = vmatprep.subr.mxu0 0.0
    %2001 = vmatpush2.msra.mxu0 0.0
    %2002 = vmatprep.subr.mxu0 0.0
    %2003 = vmatpush2.msra.mxu0 0.0
    %2004 = vmatprep.mubr.f32.mxu0 0.0
    %2005 = vmatmul.mubr.f32.gmra.mxu0 %v1935
    %v2006 = vpop.f32.mrf.mxu0
    %v2007 = vadd.f32 %v1932, %v2006
    %v2008 = vpop.f32.mrf.mxu0
    %2009 = vmatprep.mubr.f32.mxu0 0.0
    %2010 = vmatmul.mubr.f32.gmra.mxu0 %v1938
    %v2011 = vpop.f32.mrf.mxu0
    %v2012 = vadd.f32 %v1932, %v2011
    %v2013 = vpop.f32.mrf.mxu0
    %2014 = vdwg.mxu0
    %v2015 = vsel %vm92, %v2007, -inf
    %v2016 = vsel %vm92, %v2012, -inf
    %v2017 = vmax.f32 %v2015, %v2016
    %v2018 = vsub.f32 %v2007, %v2017
    %v2019 = vsub.f32 %v2012, %v2017
    %v2020 = vmul.f32 %v2018, 1.442695
    %v2021 = vpow.pop %v2020
    %v2022 = vmul.f32 %v2019, 1.442695
    %v2023 = vpow.pop %v2022
    %v2024 = vsel %vm92, %v2021, 0.0
    %v2025 = vsel %vm92, %v2023, 0.0
    %v2026 = vadd.f32 %v2024, %v2025
    %v2027 = vlog2.pop %v2026
    %v2028 = vmul.f32 %v2027, 0.6931472
    %v2029 = vadd.f32 %v2028, %v2017
    %v2030 = vsub.f32 %v2007, %v2029
    %v2031 = vsub.f32 %v2012, %v2029
    %2032 = vst.msk [vmem:[#allocation7] sm:$0xff] %vm92, %v2030
    %2033 = vst.msk [vmem:[#allocation7 + $0x8] sm:$0xff] %vm92, %v2031
    // Predicated region
    $region70: #{tpu_custom_call.1} parent=1 // pred_check
      _
    $region71: #{tpu_custom_call.1} parent=1 // pred_check_branch
      %2035 = sbr.rel (0) target = $region73
    $region72: #{tpu_custom_call.1} parent=1 // pred_region
      %s2037 = ssub.s32 256, 256
      %2038 = vsyncadd [#allocation4], %s2037
      %s2039 = sshll.u32 [#allocation7], 4
      %s2040 = int_to_ptr.vmem [resolvable:$true] %s2039
      %2045 = dma.vmem_to_hbm [thread:$0]  %s2040, 256, %s15, [#allocation4], 128, 128, 8
    $region73: #{tpu_custom_call.1} parent=1 // pred_fallthru
      _
    // Predicated region
    $region74: #{tpu_custom_call.1} parent=1 // pred_check
      _
    $region75: #{tpu_custom_call.1} parent=1 // pred_check_branch
      %2047 = sbr.rel (0) target = $region77
    $region76: #{tpu_custom_call.1} parent=1 // pred_region
      %2048 = dma.done [#allocation4], 256
    $region77: #{tpu_custom_call.1} parent=1 // pred_fallthru
      _
    %2049 = vsyncpa [#allocation3], 1
    %2050 = vsyncpa [#allocation6], 1
    %2051 = vsyncpa [#allocation4], 1

</llo_original>
